<compile_context>
chip_gen: v5e
topology: v5e:2x2
jax: 0.10.0
libtpu: 0.0.40
codegen_flags: <defaults>
</compile_context>

<pallas_src>
import jax
import jax.numpy as jnp
from jax import lax
from jax.experimental import pallas as pl
from jax.experimental.pallas import tpu as pltpu


def pitch_encoder_kernel(packed_ref, lo_ref, hi_ref, embt_ref, out_ref):
    # packed_ref: (3, tok) — row 0 = pitch, row 1 = v_flag, row 2 = keep
    p = packed_ref[0:1, :]        # (1, tok)   tokens on lanes
    vflag = packed_ref[1:2, :]    # (1, tok)
    keep = packed_ref[2:3, :]     # (1, tok)   1.0 = keep, 0.0 = masked_fill

    lo = lo_ref[...]              # (n_bins, 1) = [-inf, b0, ..., b_{n-2}]
    hi = hi_ref[...]              # (n_bins, 1) = [b0, ..., b_{n-2}, +inf]

    # torch.bucketize(p, bins, right=False): bucket j  <=>  bins[j-1] < p <= bins[j].
    # Single bool->f32 cast; no intermediate f32 compare arrays.
    onehot = jnp.logical_and(lo < p, p <= hi).astype(jnp.float32)   # (n_bins, tok)

    # Embedding gather on the MXU: (E, n_bins) @ (n_bins, tok) -> (E, tok).
    # Precision pinned so the f32 table is gathered exactly (multi-pass bf16).
    emb = lax.dot_general(
        embt_ref[...], onehot,
        dimension_numbers=(((1,), (0,)), ((), ())),
        precision=lax.Precision.HIGHEST,
        preferred_element_type=jnp.float32,
    )                                                               # (E, tok)

    # Fused epilogue: append the v_flag row, one keep-multiply, one lane-dense
    # full-block store (no width-1 sublane stores).
    out_ref[...] = jnp.concatenate([emb, vflag], axis=0) * keep     # (E+1, tok)


def _tensorcores_per_chip():
    """Rough per-chip TensorCore count from the device kind (perf-only hint)."""
    try:
        kind = jax.devices()[0].device_kind.lower()
    except Exception:
        return 2
    # v5e / v6e ("lite" family) expose a single TensorCore per chip.
    if "lite" in kind or "v5e" in kind or "v6e" in kind:
        return 1
    # v7x (and v4/v5p megacore) expose 2 TensorCores per chip.
    return 2


def _pick_tok_tile(n_tokens, n_cores):
    """Pick the token tile (multiple of 128)."""
    n_pad128 = pl.cdiv(n_tokens, 128) * 128
    if n_cores <= 1:
        # Single-TC chip: the grid is a serial loop -> avoid extra per-step
        # overhead; use one big tile when it comfortably fits VMEM.
        if n_pad128 <= 2048:
            return n_pad128
        return 1024
    # Multi-TC chip: want at least `n_cores` grid steps so every core gets work.
    if n_pad128 <= n_cores * 128:
        return 128
    tile = min(1024, n_pad128 // n_cores)
    return max(128, (tile // 128) * 128)


def pitch_encoder(pitch, v_flag, pitch_mask, pitch_bins, emb_table,
                  *, tok_tile=None, return_channels_major=False):
    """pitch, v_flag: (B, T); pitch_mask: (B, T) bool.

    Returns (B, T, E+1) f32 by default.  If `return_channels_major=True`,
    returns the kernel-native (E+1, B*T) layout and skips the post-kernel
    transpose (a full extra HBM read+write) — use it when the consumer can
    take channels-major input.
    """
    B, T = pitch.shape
    n_bins, E = emb_table.shape
    assert pitch_bins.shape == (n_bins - 1,)

    N = B * T                                    # fold B into the token/lane axis
    if tok_tile is None:
        tok_tile = _pick_tok_tile(N, _tensorcores_per_chip())
    assert tok_tile % 128 == 0
    n_tiles = pl.cdiv(N, tok_tile)
    N_pad = n_tiles * tok_tile

    # Pack the three per-token scalars into one (3, N) operand -> one DMA/step.
    keep_f = jnp.where(pitch_mask, 0.0, 1.0)
    packed = jnp.stack([
        pitch.astype(jnp.float32).reshape(N),
        v_flag.astype(jnp.float32).reshape(N),
        keep_f.astype(jnp.float32).reshape(N),
    ], axis=0)                                   # (3, N)
    if N_pad != N:
        packed = jnp.pad(packed, ((0, 0), (0, N_pad - N)))

    bins_f = pitch_bins.astype(jnp.float32)
    bins_lo = jnp.concatenate(
        [jnp.full((1,), -jnp.inf, jnp.float32), bins_f]).reshape(n_bins, 1)
    bins_hi = jnp.concatenate(
        [bins_f, jnp.full((1,), jnp.inf, jnp.float32)]).reshape(n_bins, 1)
    emb_t = emb_table.astype(jnp.float32).T      # (E, n_bins): tokens land on MXU lanes

    out = pl.pallas_call(
        pitch_encoder_kernel,
        out_shape=jax.ShapeDtypeStruct((E + 1, N_pad), jnp.float32),
        grid_spec=pltpu.PrefetchScalarGridSpec(
            num_scalar_prefetch=0,
            grid=(n_tiles,),
            in_specs=[
                pl.BlockSpec((3, tok_tile), lambda t: (0, t)),    # packed pitch/vflag/keep
                pl.BlockSpec((n_bins, 1), lambda t: (0, 0)),      # bins_lo  (resident)
                pl.BlockSpec((n_bins, 1), lambda t: (0, 0)),      # bins_hi  (resident)
                pl.BlockSpec((E, n_bins), lambda t: (0, 0)),      # emb_table^T (resident)
            ],
            out_specs=pl.BlockSpec((E + 1, tok_tile), lambda t: (0, t)),
        ),
        # TODO(synk): if xprof on v7x shows one TensorCore idle with plain
        # "parallel", switch to pltpu.CORE_PARALLEL on this axis.
        compiler_params=pltpu.CompilerParams(dimension_semantics=("parallel",)),
    )(packed, bins_lo, bins_hi, emb_t)

    if N_pad != N:
        out = out[:, :N]
    if return_channels_major:
        return out                               # (E+1, B*T), no extra HBM pass
    # Layout plumbing back to the PyTorch output layout (B, T, E+1).
    return out.T.reshape(B, T, E + 1)


def pitch_encoder_reference(pitch, v_flag, pitch_mask, pitch_bins, emb_table):
    """Pure-JAX reference matching the PyTorch forward."""
    idx = jnp.sum(pitch[..., None] > pitch_bins[None, None, :], axis=-1)   # bucketize, right=False
    emb = emb_table[idx]                                                   # (B, T, E)
    out = jnp.concatenate([emb, v_flag[..., None]], axis=-1)               # (B, T, E+1)
    return jnp.where(pitch_mask[..., None], 0.0, out)


if __name__ == "__main__":
    B, T, E, N_BINS = 2, 256, 32, 256
    PITCH_MIN, PITCH_MAX = 50.0, 500.0

    key = jax.random.PRNGKey(0)
    k_pitch, k_vflag, k_mask, k_emb = jax.random.split(key, 4)

    # Deterministic parameters (synthetic; shapes follow the module __init__).
    pitch_bins = jnp.linspace(PITCH_MIN, PITCH_MAX, N_BINS - 1, dtype=jnp.float32)
    emb_table = jax.random.normal(k_emb, (N_BINS, E), dtype=jnp.float32)

    # Inputs.
    pitch = jax.random.uniform(k_pitch, (B, T), minval=40.0, maxval=520.0, dtype=jnp.float32)
    v_flag = jax.random.bernoulli(k_vflag, 0.7, (B, T)).astype(jnp.float32)
    pitch_mask = jax.random.bernoulli(k_mask, 0.2, (B, T))  # bool

    out = pitch_encoder(pitch, v_flag, pitch_mask, pitch_bins, emb_table)
    out = jax.block_until_ready(out)

    ref = pitch_encoder_reference(pitch, v_flag, pitch_mask, pitch_bins, emb_table)
    assert out.shape == (B, T, E + 1)
    assert jnp.allclose(out, ref, atol=1e-5, rtol=1e-5), "mismatch vs reference"

    print("KERNEL_OK")
</pallas_src>

<mosaic_0001>
module attributes {stable_mosaic.version = 11 : i64} {
  func.func @pitch_encoder_kernel(%arg0: i32, %arg1: memref<3x256xf32, #tpu.memory_space<vmem>>, %arg2: memref<256x1xf32, #tpu.memory_space<vmem>>, %arg3: memref<256x1xf32, #tpu.memory_space<vmem>>, %arg4: memref<32x256xf32, #tpu.memory_space<vmem>>, %arg5: memref<33x256xf32, #tpu.memory_space<vmem>>) attributes {dimension_semantics = [#tpu.dimension_semantics<parallel>], iteration_bounds = array<i64: 2>, scalar_prefetch = 0 : i64, scratch_operands = 0 : i64, tpu.core_type = #tpu.core_type<tc>, window_params = [{transform_indices = @transform_0, window_bounds = array<i64: 3, 256>}, {pipeline_mode = #tpu.pipeline_mode<synchronous>, transform_indices = @transform_1, window_bounds = array<i64: 256, 1>}, {pipeline_mode = #tpu.pipeline_mode<synchronous>, transform_indices = @transform_2, window_bounds = array<i64: 256, 1>}, {pipeline_mode = #tpu.pipeline_mode<synchronous>, transform_indices = @transform_3, window_bounds = array<i64: 32, 256>}, {transform_indices = @transform_4, window_bounds = array<i64: 33, 256>}]} {
    %c0 = arith.constant 0 : index
    %c0_0 = arith.constant 0 : index
    %0 = vector.load %arg1[%c0, %c0_0] : memref<3x256xf32, #tpu.memory_space<vmem>>, vector<1x256xf32>
    %c1 = arith.constant 1 : index
    %c0_1 = arith.constant 0 : index
    %1 = vector.load %arg1[%c1, %c0_1] : memref<3x256xf32, #tpu.memory_space<vmem>>, vector<1x256xf32>
    %c2 = arith.constant 2 : index
    %c0_2 = arith.constant 0 : index
    %2 = vector.load %arg1[%c2, %c0_2] : memref<3x256xf32, #tpu.memory_space<vmem>>, vector<1x256xf32>
    %c0_3 = arith.constant 0 : index
    %c0_4 = arith.constant 0 : index
    %3 = vector.load %arg2[%c0_3, %c0_4] : memref<256x1xf32, #tpu.memory_space<vmem>>, vector<256x1xf32>
    %c0_5 = arith.constant 0 : index
    %c0_6 = arith.constant 0 : index
    %4 = vector.load %arg3[%c0_5, %c0_6] : memref<256x1xf32, #tpu.memory_space<vmem>>, vector<256x1xf32>
    %5 = vector.broadcast %3 : vector<256x1xf32> to vector<256x256xf32>
    %6 = vector.broadcast %0 : vector<1x256xf32> to vector<256x256xf32>
    %7 = arith.cmpf olt, %5, %6 : vector<256x256xf32>
    %8 = vector.broadcast %0 : vector<1x256xf32> to vector<256x256xf32>
    %9 = vector.broadcast %4 : vector<256x1xf32> to vector<256x256xf32>
    %10 = arith.cmpf ole, %8, %9 : vector<256x256xf32>
    %11 = arith.andi %7, %10 : vector<256x256xi1>
    %12 = arith.extui %11 : vector<256x256xi1> to vector<256x256xi32>
    %13 = arith.sitofp %12 : vector<256x256xi32> to vector<256x256xf32>
    %c0_7 = arith.constant 0 : index
    %c0_8 = arith.constant 0 : index
    %14 = vector.load %arg4[%c0_7, %c0_8] : memref<32x256xf32, #tpu.memory_space<vmem>>, vector<32x256xf32>
    %cst = arith.constant dense<0.000000e+00> : vector<32x256xf32>
    %15 = tpu.matmul %14, %13, %cst {dimension_numbers = #tpu.dot_dimension_numbers<[1], [0], [0], [1], [0, 0, 1, 1], [], []>, precision = #tpu.contract_precision<fp32>} : vector<32x256xf32>, vector<256x256xf32>, vector<32x256xf32> -> vector<32x256xf32>
    %16 = tpu.concatenate %15, %1 in 0 : vector<32x256xf32>, vector<1x256xf32> -> vector<33x256xf32>
    %17 = vector.broadcast %2 : vector<1x256xf32> to vector<33x256xf32>
    %18 = arith.mulf %16, %17 : vector<33x256xf32>
    %c0_9 = arith.constant 0 : index
    %c0_10 = arith.constant 0 : index
    %19 = vector.load %arg5[%c0_9, %c0_10] : memref<33x256xf32, #tpu.memory_space<vmem>>, vector<33x256xf32>
    tpu.vector_store %arg5[%c0_9, %c0_10], %18 {strides = array<i32>} : memref<33x256xf32, #tpu.memory_space<vmem>>, vector<33x256xf32>,
    return
  }
  func.func @transform_0(%arg0: i32) -> (i32, i32) {
    %c0_i32 = arith.constant 0 : i32
    %c0_i32_0 = arith.constant 0 : i32
    return %c0_i32, %arg0 : i32, i32
  }
  func.func @transform_1(%arg0: i32) -> (i32, i32) {
    %c0_i32 = arith.constant 0 : i32
    %c0_i32_0 = arith.constant 0 : i32
    %c0_i32_1 = arith.constant 0 : i32
    return %c0_i32, %c0_i32_0 : i32, i32
  }
  func.func @transform_2(%arg0: i32) -> (i32, i32) {
    %c0_i32 = arith.constant 0 : i32
    %c0_i32_0 = arith.constant 0 : i32
    %c0_i32_1 = arith.constant 0 : i32
    return %c0_i32, %c0_i32_0 : i32, i32
  }
  func.func @transform_3(%arg0: i32) -> (i32, i32) {
    %c0_i32 = arith.constant 0 : i32
    %c0_i32_0 = arith.constant 0 : i32
    %c0_i32_1 = arith.constant 0 : i32
    return %c0_i32, %c0_i32_0 : i32, i32
  }
  func.func @transform_4(%arg0: i32) -> (i32, i32) {
    %c0_i32 = arith.constant 0 : i32
    %c0_i32_0 = arith.constant 0 : i32
    return %c0_i32, %arg0 : i32, i32
  }
}

</mosaic_0001>

<llo_original>
// kernel: tpu_custom_call.1
$region0: #{tpu_custom_call.1}
  #allocation0 [shape = 'u32[]', space=smem, size = 0x4, offset = 0x4, fixed_abs, tag = 'smem constant byte address 0x4 - core index']
  #allocation1 [shape = 'u32[72,128]{1,0:T(1,128)}', space=vmem, size = 0x9000, scoped, tag = 'internal scratch']
  %s0 = inlined_call_operand.vmem [shape: f32[3,512], index: 0, kind: input, shape index: {}]
  %s1 = inlined_call_operand.vmem [shape: f32[256,1], index: 1, kind: input, shape index: {}]
  %s2 = inlined_call_operand.vmem [shape: f32[256,1], index: 2, kind: input, shape index: {}]
  %s3 = inlined_call_operand.vmem [shape: f32[32,256], index: 3, kind: input, shape index: {}]
  %s4 = inlined_call_operand.hbm [shape: f32[33,512], index: 4, kind: output, shape index: {}]
  %s5 = sld [smem:[#allocation0]]
  $region49: #{tpu_custom_call.1} parent=0
    _
  %s7 = ssub.s32 1, %s5
  %s8 = scalar_select 0, %s7, %s5
  $region1: #{tpu_custom_call.1} parent=0
    #allocation2 [shape = 'u8[81920]{0}', space=vmem, size = 0x14000, scoped, tag = 'output window, operand 0']
    #allocation3 [shape = 's32[2]{0}', space=sflag, size = 0x8, scoped, tag = 'scoped memory for tpu_custom_call.1']
    %9 = vsyncpa [#allocation3], 0
    %s10 = scalar_lea.sflag [#allocation3], 1
    %11 = vsyncpa %s10, 0
    loop: start=0, step=1, limit=4
    $region2: #{tpu_custom_call.1} parent=1 // loop_pre_header
      _
    $region3: #{tpu_custom_call.1} parent=1 // loop_header
      %s13 = sphi 0, %s17
      %p14 = scmp.ge.s32.totalorder %s13, 4
      %s23 = sphi 0, %s25
      %s26 = sphi 0, %s23
      %s27 = sphi 0, %s26
      %s43 = sphi 0, %s27
      %s47 = sphi 0, %s47
      %s49 = sphi 0, %s47
      %s50 = sphi 0, %s49
      %s64 = sphi 0, %s50
      %s68 = sphi 0, %s68
      %s70 = sphi 0, %s68
      %s71 = sphi 0, %s70
      %s85 = sphi 0, %s71
      %s89 = sphi 0, %s89
      %s91 = sphi 0, %s89
      %s92 = sphi 0, %s91
      %s106 = sphi 0, %s92
      %s112 = sphi 0, %s114
      %s115 = sphi 0, %s112
      %s116 = sphi 0, %s115
      %s132 = sphi 0, %s116
    $region4: #{tpu_custom_call.1} parent=1 // loop_header_branch
      %16 = sbr.rel (%p14) target = $region8
    $region5: #{tpu_custom_call.1} parent=1 // loop_body
      %s18 = ssub.s32 %s13, 1
      %s19 = ssub.s32 %s13, 2
      %s20 = sadd.s32 %s13, 1
      %s21 = ssub.s32 %s13, %s20
      %p22 = scmp.eq.s32.totalorder %s21, 0
      %s24 = sadd.s32 %s23, 1
      %s25 = scalar_select %p22, %s23, %s24
      %p28 = pneg %p22
      %p29 = scmp.eq.s32.totalorder %s13, 1
      %p30 = por %p28, %p29
      %p31 = scmp.ne.s32.totalorder %s23, %s26
      %p32 = scmp.eq.s32.totalorder %s13, 0
      %p33 = por %p31, %p32
      %p34 = scmp.ne.s32.totalorder %s23, %s26
      %p35 = scmp.eq.s32.totalorder %s18, 1
      %p36 = por %p34, %p35
      %p37 = scmp.ne.s32.totalorder %s26, %s27
      %p38 = scmp.eq.s32.totalorder %s18, 0
      %p39 = por %p37, %p38
      %p40 = scmp.ne.s32.totalorder %s26, %s27
      %p41 = scmp.eq.s32.totalorder %s19, 1
      %p42 = por %p40, %p41
      %p44 = scmp.ne.s32.totalorder %s27, %s43
      %p45 = scmp.eq.s32.totalorder %s19, 0
      %p46 = por %p44, %p45
      %s48 = sadd.s32 %s47, 1
      %p51 = scmp.eq.s32.totalorder %s13, 1
      %p52 = scmp.ne.s32.totalorder %s47, %s49
      %p53 = scmp.eq.s32.totalorder %s13, 0
      %p54 = por %p52, %p53
      %p55 = scmp.ne.s32.totalorder %s47, %s49
      %p56 = scmp.eq.s32.totalorder %s18, 1
      %p57 = por %p55, %p56
      %p58 = scmp.ne.s32.totalorder %s49, %s50
      %p59 = scmp.eq.s32.totalorder %s18, 0
      %p60 = por %p58, %p59
      %p61 = scmp.ne.s32.totalorder %s49, %s50
      %p62 = scmp.eq.s32.totalorder %s19, 1
      %p63 = por %p61, %p62
      %p65 = scmp.ne.s32.totalorder %s50, %s64
      %p66 = scmp.eq.s32.totalorder %s19, 0
      %p67 = por %p65, %p66
      %s69 = sadd.s32 %s68, 1
      %p72 = scmp.eq.s32.totalorder %s13, 1
      %p73 = scmp.ne.s32.totalorder %s68, %s70
      %p74 = scmp.eq.s32.totalorder %s13, 0
      %p75 = por %p73, %p74
      %p76 = scmp.ne.s32.totalorder %s68, %s70
      %p77 = scmp.eq.s32.totalorder %s18, 1
      %p78 = por %p76, %p77
      %p79 = scmp.ne.s32.totalorder %s70, %s71
      %p80 = scmp.eq.s32.totalorder %s18, 0
      %p81 = por %p79, %p80
      %p82 = scmp.ne.s32.totalorder %s70, %s71
      %p83 = scmp.eq.s32.totalorder %s19, 1
      %p84 = por %p82, %p83
      %p86 = scmp.ne.s32.totalorder %s71, %s85
      %p87 = scmp.eq.s32.totalorder %s19, 0
      %p88 = por %p86, %p87
      %s90 = sadd.s32 %s89, 1
      %p93 = scmp.eq.s32.totalorder %s13, 1
      %p94 = scmp.ne.s32.totalorder %s89, %s91
      %p95 = scmp.eq.s32.totalorder %s13, 0
      %p96 = por %p94, %p95
      %p97 = scmp.ne.s32.totalorder %s89, %s91
      %p98 = scmp.eq.s32.totalorder %s18, 1
      %p99 = por %p97, %p98
      %p100 = scmp.ne.s32.totalorder %s91, %s92
      %p101 = scmp.eq.s32.totalorder %s18, 0
      %p102 = por %p100, %p101
      %p103 = scmp.ne.s32.totalorder %s91, %s92
      %p104 = scmp.eq.s32.totalorder %s19, 1
      %p105 = por %p103, %p104
      %p107 = scmp.ne.s32.totalorder %s92, %s106
      %p108 = scmp.eq.s32.totalorder %s19, 0
      %p109 = por %p107, %p108
      %s110 = ssub.s32 %s13, %s20
      %p111 = scmp.eq.s32.totalorder %s110, 0
      %s113 = sadd.s32 %s112, 1
      %s114 = scalar_select %p111, %s112, %s113
      %p117 = pneg %p111
      %p118 = scmp.eq.s32.totalorder %s13, 1
      %p119 = por %p117, %p118
      %p120 = scmp.ne.s32.totalorder %s112, %s115
      %p121 = scmp.eq.s32.totalorder %s13, 0
      %p122 = por %p120, %p121
      %p123 = scmp.ne.s32.totalorder %s112, %s115
      %p124 = scmp.eq.s32.totalorder %s18, 1
      %p125 = por %p123, %p124
      %p126 = scmp.ne.s32.totalorder %s115, %s116
      %p127 = scmp.eq.s32.totalorder %s18, 0
      %p128 = por %p126, %p127
      %p129 = scmp.ne.s32.totalorder %s115, %s116
      %p130 = scmp.eq.s32.totalorder %s19, 1
      %p131 = por %p129, %p130
      %p133 = scmp.ne.s32.totalorder %s116, %s132
      %p134 = scmp.eq.s32.totalorder %s19, 0
      %p135 = por %p133, %p134
      %p136 = scmp.le.s32.totalorder 1, %s13
      %p137 = scmp.lt.s32.totalorder %s13, 3
      %p138 = pnand %p136, %p137
      %p139 = pneg %p138
      // Predicated region
      $region9: #{tpu_custom_call.1} parent=5 // pred_check
        _
      $region10: #{tpu_custom_call.1} parent=5 // pred_check_branch
        %141 = sbr.rel (%p138) target = $region12
      $region11: #{tpu_custom_call.1} parent=5 // pred_region
        %s142 = ssub.s32 %s13, 1
        // Predicated region
        $region13: #{tpu_custom_call.1} parent=11 // pred_check
          %p143 = pneg %p60
        $region14: #{tpu_custom_call.1} parent=11 // pred_check_branch
          %145 = sbr.rel (%p143) target = $region16
        $region15: #{tpu_custom_call.1} parent=11 // pred_region
          _
        $region16: #{tpu_custom_call.1} parent=11 // pred_fallthru
          _
        // Predicated region
        $region17: #{tpu_custom_call.1} parent=11 // pred_check
          %p146 = pneg %p81
        $region18: #{tpu_custom_call.1} parent=11 // pred_check_branch
          %148 = sbr.rel (%p146) target = $region20
        $region19: #{tpu_custom_call.1} parent=11 // pred_region
          _
        $region20: #{tpu_custom_call.1} parent=11 // pred_fallthru
          _
        // Predicated region
        $region21: #{tpu_custom_call.1} parent=11 // pred_check
          %p149 = pneg %p102
        $region22: #{tpu_custom_call.1} parent=11 // pred_check_branch
          %151 = sbr.rel (%p149) target = $region24
        $region23: #{tpu_custom_call.1} parent=11 // pred_region
          _
        $region24: #{tpu_custom_call.1} parent=11 // pred_fallthru
          _
      $region12: #{tpu_custom_call.1} parent=5 // pred_fallthru
        _
      %p152 = scmp.lt.s32.totalorder %s13, 2
      // Predicated region
      $region25: #{tpu_custom_call.1} parent=5 // pred_check
        %p153 = pneg %p152
      $region26: #{tpu_custom_call.1} parent=5 // pred_check_branch
        %155 = sbr.rel (%p153) target = $region28
      $region27: #{tpu_custom_call.1} parent=5 // pred_region
        // Predicated region
        $region29: #{tpu_custom_call.1} parent=27 // pred_check
          %p156 = pneg %p33
        $region30: #{tpu_custom_call.1} parent=27 // pred_check_branch
          %158 = sbr.rel (%p156) target = $region32
        $region31: #{tpu_custom_call.1} parent=27 // pred_region
          %s159 = smul.u32 2, %s13
          %p160 = scmp.lt.s32.totalorder %s159, 3
          %s161 = scalar_select %p160, %s159, 3
          %s162 = smul.addr %s161, 4
          %s163 = scalar_lea.vmem %s0, %s162
          %s164 = smul.u32 2, %s13
        $region32: #{tpu_custom_call.1} parent=27 // pred_fallthru
          _
      $region28: #{tpu_custom_call.1} parent=5 // pred_fallthru
        _
      %p165 = scmp.le.s32.totalorder 1, %s13
      %p166 = scmp.lt.s32.totalorder %s13, 3
      %p167 = pnand %p165, %p166
      %p168 = pneg %p167
      // Predicated region
      $region33: #{tpu_custom_call.1} parent=5 // pred_check
        _
      $region34: #{tpu_custom_call.1} parent=5 // pred_check_branch
        %170 = sbr.rel (%p167) target = $region36
      $region35: #{tpu_custom_call.1} parent=5 // pred_region
        %s171 = ssub.s32 %s13, 1
        %s172 = smul.u32 2, %s18
        %p173 = scmp.lt.s32.totalorder %s172, 3
        %s174 = scalar_select %p173, %s172, 3
        %s175 = smul.addr %s174, 4
        %s176 = scalar_lea.vmem %s0, %s175
        %p177 = pneg %p39
        %p178 = pneg %p36
        %p179 = pneg %p60
        %p180 = pneg %p57
        %p181 = pneg %p81
        %p182 = pneg %p78
        %p183 = pneg %p102
        %p184 = pneg %p99
        %p185 = pneg %p128
        %p186 = pneg %p125
        %s187 = sand.u32 %s115, 1
        %s188 = scalar_lea.sflag [#allocation3], %s187
        %s189 = sand.u32 %s115, 1
        %s190 = smul.addr %s189, 80
        %s191 = scalar_lea.vmem [#allocation2], %s190
        %s192 = smul.u32 2, %s18
        %p193 = scmp.lt.s32.totalorder %s192, 3
        %s194 = scalar_select %p193, %s192, 3
        %s195 = smul.addr %s194, 4
        %s196 = scalar_lea.vmem %s0, %s195
        %s197 = smul.u32 2, %s18
        %s198 = smul.u32 2, %s18
        %v199 = vld [vmem:[%s196] ss:$4 sm:$0x3]
        %s200 = scalar_lea.vmem %s196, 1
        %v201 = vld [vmem:[%s200] ss:$4 sm:$0x3]
        %s202 = scalar_lea.vmem %s196, 2
        %v203 = vld [vmem:[%s202] ss:$4 sm:$0x3]
        %v204 = vld [vmem:[%s1] sm:$0xff]
        %v205 = vld [vmem:[%s1 + $0x8] sm:$0xff]
        %v206 = vld [vmem:[%s1 + $0x10] sm:$0xff]
        %v207 = vld [vmem:[%s1 + $0x18] sm:$0xff]
        %v208 = vld [vmem:[%s1 + $0x20] sm:$0xff]
        %v209 = vld [vmem:[%s1 + $0x28] sm:$0xff]
        %v210 = vld [vmem:[%s1 + $0x30] sm:$0xff]
        %v211 = vld [vmem:[%s1 + $0x38] sm:$0xff]
        %v212 = vld [vmem:[%s1 + $0x40] sm:$0xff]
        %v213 = vld [vmem:[%s1 + $0x48] sm:$0xff]
        %v214 = vld [vmem:[%s1 + $0x50] sm:$0xff]
        %v215 = vld [vmem:[%s1 + $0x58] sm:$0xff]
        %v216 = vld [vmem:[%s1 + $0x60] sm:$0xff]
        %v217 = vld [vmem:[%s1 + $0x68] sm:$0xff]
        %v218 = vld [vmem:[%s1 + $0x70] sm:$0xff]
        %v219 = vld [vmem:[%s1 + $0x78] sm:$0xff]
        %v220 = vld [vmem:[%s1 + $0x80] sm:$0xff]
        %v221 = vld [vmem:[%s1 + $0x88] sm:$0xff]
        %v222 = vld [vmem:[%s1 + $0x90] sm:$0xff]
        %v223 = vld [vmem:[%s1 + $0x98] sm:$0xff]
        %v224 = vld [vmem:[%s1 + $0xa0] sm:$0xff]
        %v225 = vld [vmem:[%s1 + $0xa8] sm:$0xff]
        %v226 = vld [vmem:[%s1 + $0xb0] sm:$0xff]
        %v227 = vld [vmem:[%s1 + $0xb8] sm:$0xff]
        %v228 = vld [vmem:[%s1 + $0xc0] sm:$0xff]
        %v229 = vld [vmem:[%s1 + $0xc8] sm:$0xff]
        %v230 = vld [vmem:[%s1 + $0xd0] sm:$0xff]
        %v231 = vld [vmem:[%s1 + $0xd8] sm:$0xff]
        %v232 = vld [vmem:[%s1 + $0xe0] sm:$0xff]
        %v233 = vld [vmem:[%s1 + $0xe8] sm:$0xff]
        %v234 = vld [vmem:[%s1 + $0xf0] sm:$0xff]
        %v235 = vld [vmem:[%s1 + $0xf8] sm:$0xff]
        %v236 = vld [vmem:[%s2] sm:$0xff]
        %v237 = vld [vmem:[%s2 + $0x8] sm:$0xff]
        %v238 = vld [vmem:[%s2 + $0x10] sm:$0xff]
        %v239 = vld [vmem:[%s2 + $0x18] sm:$0xff]
        %v240 = vld [vmem:[%s2 + $0x20] sm:$0xff]
        %v241 = vld [vmem:[%s2 + $0x28] sm:$0xff]
        %v242 = vld [vmem:[%s2 + $0x30] sm:$0xff]
        %v243 = vld [vmem:[%s2 + $0x38] sm:$0xff]
        %v244 = vld [vmem:[%s2 + $0x40] sm:$0xff]
        %v245 = vld [vmem:[%s2 + $0x48] sm:$0xff]
        %v246 = vld [vmem:[%s2 + $0x50] sm:$0xff]
        %v247 = vld [vmem:[%s2 + $0x58] sm:$0xff]
        %v248 = vld [vmem:[%s2 + $0x60] sm:$0xff]
        %v249 = vld [vmem:[%s2 + $0x68] sm:$0xff]
        %v250 = vld [vmem:[%s2 + $0x70] sm:$0xff]
        %v251 = vld [vmem:[%s2 + $0x78] sm:$0xff]
        %v252 = vld [vmem:[%s2 + $0x80] sm:$0xff]
        %v253 = vld [vmem:[%s2 + $0x88] sm:$0xff]
        %v254 = vld [vmem:[%s2 + $0x90] sm:$0xff]
        %v255 = vld [vmem:[%s2 + $0x98] sm:$0xff]
        %v256 = vld [vmem:[%s2 + $0xa0] sm:$0xff]
        %v257 = vld [vmem:[%s2 + $0xa8] sm:$0xff]
        %v258 = vld [vmem:[%s2 + $0xb0] sm:$0xff]
        %v259 = vld [vmem:[%s2 + $0xb8] sm:$0xff]
        %v260 = vld [vmem:[%s2 + $0xc0] sm:$0xff]
        %v261 = vld [vmem:[%s2 + $0xc8] sm:$0xff]
        %v262 = vld [vmem:[%s2 + $0xd0] sm:$0xff]
        %v263 = vld [vmem:[%s2 + $0xd8] sm:$0xff]
        %v264 = vld [vmem:[%s2 + $0xe0] sm:$0xff]
        %v265 = vld [vmem:[%s2 + $0xe8] sm:$0xff]
        %v266 = vld [vmem:[%s2 + $0xf0] sm:$0xff]
        %v267 = vld [vmem:[%s2 + $0xf8] sm:$0xff]
        %269 = vset.pattern.permute.xlu0 0
        %270 = vperm.xlu0 %269, %v204
        %v271 = vpop.permute.xlu0 %270
        %274 = vset.pattern.permute.xlu0 0
        %275 = vperm.xlu0 %274, %v205
        %v276 = vpop.permute.xlu0 %275
        %279 = vset.pattern.permute.xlu0 0
        %280 = vperm.xlu0 %279, %v206
        %v281 = vpop.permute.xlu0 %280
        %284 = vset.pattern.permute.xlu0 0
        %285 = vperm.xlu0 %284, %v207
        %v286 = vpop.permute.xlu0 %285
        %289 = vset.pattern.permute.xlu0 0
        %290 = vperm.xlu0 %289, %v208
        %v291 = vpop.permute.xlu0 %290
        %294 = vset.pattern.permute.xlu0 0
        %295 = vperm.xlu0 %294, %v209
        %v296 = vpop.permute.xlu0 %295
        %299 = vset.pattern.permute.xlu0 0
        %300 = vperm.xlu0 %299, %v210
        %v301 = vpop.permute.xlu0 %300
        %304 = vset.pattern.permute.xlu0 0
        %305 = vperm.xlu0 %304, %v211
        %v306 = vpop.permute.xlu0 %305
        %309 = vset.pattern.permute.xlu0 0
        %310 = vperm.xlu0 %309, %v212
        %v311 = vpop.permute.xlu0 %310
        %314 = vset.pattern.permute.xlu0 0
        %315 = vperm.xlu0 %314, %v213
        %v316 = vpop.permute.xlu0 %315
        %319 = vset.pattern.permute.xlu0 0
        %320 = vperm.xlu0 %319, %v214
        %v321 = vpop.permute.xlu0 %320
        %324 = vset.pattern.permute.xlu0 0
        %325 = vperm.xlu0 %324, %v215
        %v326 = vpop.permute.xlu0 %325
        %329 = vset.pattern.permute.xlu0 0
        %330 = vperm.xlu0 %329, %v216
        %v331 = vpop.permute.xlu0 %330
        %334 = vset.pattern.permute.xlu0 0
        %335 = vperm.xlu0 %334, %v217
        %v336 = vpop.permute.xlu0 %335
        %339 = vset.pattern.permute.xlu0 0
        %340 = vperm.xlu0 %339, %v218
        %v341 = vpop.permute.xlu0 %340
        %344 = vset.pattern.permute.xlu0 0
        %345 = vperm.xlu0 %344, %v219
        %v346 = vpop.permute.xlu0 %345
        %349 = vset.pattern.permute.xlu0 0
        %350 = vperm.xlu0 %349, %v220
        %v351 = vpop.permute.xlu0 %350
        %354 = vset.pattern.permute.xlu0 0
        %355 = vperm.xlu0 %354, %v221
        %v356 = vpop.permute.xlu0 %355
        %359 = vset.pattern.permute.xlu0 0
        %360 = vperm.xlu0 %359, %v222
        %v361 = vpop.permute.xlu0 %360
        %364 = vset.pattern.permute.xlu0 0
        %365 = vperm.xlu0 %364, %v223
        %v366 = vpop.permute.xlu0 %365
        %369 = vset.pattern.permute.xlu0 0
        %370 = vperm.xlu0 %369, %v224
        %v371 = vpop.permute.xlu0 %370
        %374 = vset.pattern.permute.xlu0 0
        %375 = vperm.xlu0 %374, %v225
        %v376 = vpop.permute.xlu0 %375
        %379 = vset.pattern.permute.xlu0 0
        %380 = vperm.xlu0 %379, %v226
        %v381 = vpop.permute.xlu0 %380
        %384 = vset.pattern.permute.xlu0 0
        %385 = vperm.xlu0 %384, %v227
        %v386 = vpop.permute.xlu0 %385
        %389 = vset.pattern.permute.xlu0 0
        %390 = vperm.xlu0 %389, %v228
        %v391 = vpop.permute.xlu0 %390
        %394 = vset.pattern.permute.xlu0 0
        %395 = vperm.xlu0 %394, %v229
        %v396 = vpop.permute.xlu0 %395
        %399 = vset.pattern.permute.xlu0 0
        %400 = vperm.xlu0 %399, %v230
        %v401 = vpop.permute.xlu0 %400
        %404 = vset.pattern.permute.xlu0 0
        %405 = vperm.xlu0 %404, %v231
        %v406 = vpop.permute.xlu0 %405
        %409 = vset.pattern.permute.xlu0 0
        %410 = vperm.xlu0 %409, %v232
        %v411 = vpop.permute.xlu0 %410
        %414 = vset.pattern.permute.xlu0 0
        %415 = vperm.xlu0 %414, %v233
        %v416 = vpop.permute.xlu0 %415
        %419 = vset.pattern.permute.xlu0 0
        %420 = vperm.xlu0 %419, %v234
        %v421 = vpop.permute.xlu0 %420
        %424 = vset.pattern.permute.xlu0 0
        %425 = vperm.xlu0 %424, %v235
        %v426 = vpop.permute.xlu0 %425
        %v429 = vperm.slane %v199, 0
        %v430 = vperm.slane %v199, 1
        %vm433 = vcmp.lt.f32.partialorder %v271, %v429
        %vm434 = vcmp.lt.f32.partialorder %v271, %v430
        %vm435 = vcmp.lt.f32.partialorder %v276, %v429
        %vm436 = vcmp.lt.f32.partialorder %v276, %v430
        %vm437 = vcmp.lt.f32.partialorder %v281, %v429
        %vm438 = vcmp.lt.f32.partialorder %v281, %v430
        %vm439 = vcmp.lt.f32.partialorder %v286, %v429
        %vm440 = vcmp.lt.f32.partialorder %v286, %v430
        %vm441 = vcmp.lt.f32.partialorder %v291, %v429
        %vm442 = vcmp.lt.f32.partialorder %v291, %v430
        %vm443 = vcmp.lt.f32.partialorder %v296, %v429
        %vm444 = vcmp.lt.f32.partialorder %v296, %v430
        %vm445 = vcmp.lt.f32.partialorder %v301, %v429
        %vm446 = vcmp.lt.f32.partialorder %v301, %v430
        %vm447 = vcmp.lt.f32.partialorder %v306, %v429
        %vm448 = vcmp.lt.f32.partialorder %v306, %v430
        %vm449 = vcmp.lt.f32.partialorder %v311, %v429
        %vm450 = vcmp.lt.f32.partialorder %v311, %v430
        %vm451 = vcmp.lt.f32.partialorder %v316, %v429
        %vm452 = vcmp.lt.f32.partialorder %v316, %v430
        %vm453 = vcmp.lt.f32.partialorder %v321, %v429
        %vm454 = vcmp.lt.f32.partialorder %v321, %v430
        %vm455 = vcmp.lt.f32.partialorder %v326, %v429
        %vm456 = vcmp.lt.f32.partialorder %v326, %v430
        %vm457 = vcmp.lt.f32.partialorder %v331, %v429
        %vm458 = vcmp.lt.f32.partialorder %v331, %v430
        %vm459 = vcmp.lt.f32.partialorder %v336, %v429
        %vm460 = vcmp.lt.f32.partialorder %v336, %v430
        %vm461 = vcmp.lt.f32.partialorder %v341, %v429
        %vm462 = vcmp.lt.f32.partialorder %v341, %v430
        %vm463 = vcmp.lt.f32.partialorder %v346, %v429
        %vm464 = vcmp.lt.f32.partialorder %v346, %v430
        %vm465 = vcmp.lt.f32.partialorder %v351, %v429
        %vm466 = vcmp.lt.f32.partialorder %v351, %v430
        %vm467 = vcmp.lt.f32.partialorder %v356, %v429
        %vm468 = vcmp.lt.f32.partialorder %v356, %v430
        %vm469 = vcmp.lt.f32.partialorder %v361, %v429
        %vm470 = vcmp.lt.f32.partialorder %v361, %v430
        %vm471 = vcmp.lt.f32.partialorder %v366, %v429
        %vm472 = vcmp.lt.f32.partialorder %v366, %v430
        %vm473 = vcmp.lt.f32.partialorder %v371, %v429
        %vm474 = vcmp.lt.f32.partialorder %v371, %v430
        %vm475 = vcmp.lt.f32.partialorder %v376, %v429
        %vm476 = vcmp.lt.f32.partialorder %v376, %v430
        %vm477 = vcmp.lt.f32.partialorder %v381, %v429
        %vm478 = vcmp.lt.f32.partialorder %v381, %v430
        %vm479 = vcmp.lt.f32.partialorder %v386, %v429
        %vm480 = vcmp.lt.f32.partialorder %v386, %v430
        %vm481 = vcmp.lt.f32.partialorder %v391, %v429
        %vm482 = vcmp.lt.f32.partialorder %v391, %v430
        %vm483 = vcmp.lt.f32.partialorder %v396, %v429
        %vm484 = vcmp.lt.f32.partialorder %v396, %v430
        %vm485 = vcmp.lt.f32.partialorder %v401, %v429
        %vm486 = vcmp.lt.f32.partialorder %v401, %v430
        %vm487 = vcmp.lt.f32.partialorder %v406, %v429
        %vm488 = vcmp.lt.f32.partialorder %v406, %v430
        %vm489 = vcmp.lt.f32.partialorder %v411, %v429
        %vm490 = vcmp.lt.f32.partialorder %v411, %v430
        %vm491 = vcmp.lt.f32.partialorder %v416, %v429
        %vm492 = vcmp.lt.f32.partialorder %v416, %v430
        %vm493 = vcmp.lt.f32.partialorder %v421, %v429
        %vm494 = vcmp.lt.f32.partialorder %v421, %v430
        %vm495 = vcmp.lt.f32.partialorder %v426, %v429
        %vm496 = vcmp.lt.f32.partialorder %v426, %v430
        %498 = vset.pattern.permute.xlu0 0
        %499 = vperm.xlu0 %498, %v236
        %v500 = vpop.permute.xlu0 %499
        %503 = vset.pattern.permute.xlu0 0
        %504 = vperm.xlu0 %503, %v237
        %v505 = vpop.permute.xlu0 %504
        %508 = vset.pattern.permute.xlu0 0
        %509 = vperm.xlu0 %508, %v238
        %v510 = vpop.permute.xlu0 %509
        %513 = vset.pattern.permute.xlu0 0
        %514 = vperm.xlu0 %513, %v239
        %v515 = vpop.permute.xlu0 %514
        %518 = vset.pattern.permute.xlu0 0
        %519 = vperm.xlu0 %518, %v240
        %v520 = vpop.permute.xlu0 %519
        %523 = vset.pattern.permute.xlu0 0
        %524 = vperm.xlu0 %523, %v241
        %v525 = vpop.permute.xlu0 %524
        %528 = vset.pattern.permute.xlu0 0
        %529 = vperm.xlu0 %528, %v242
        %v530 = vpop.permute.xlu0 %529
        %533 = vset.pattern.permute.xlu0 0
        %534 = vperm.xlu0 %533, %v243
        %v535 = vpop.permute.xlu0 %534
        %538 = vset.pattern.permute.xlu0 0
        %539 = vperm.xlu0 %538, %v244
        %v540 = vpop.permute.xlu0 %539
        %543 = vset.pattern.permute.xlu0 0
        %544 = vperm.xlu0 %543, %v245
        %v545 = vpop.permute.xlu0 %544
        %548 = vset.pattern.permute.xlu0 0
        %549 = vperm.xlu0 %548, %v246
        %v550 = vpop.permute.xlu0 %549
        %553 = vset.pattern.permute.xlu0 0
        %554 = vperm.xlu0 %553, %v247
        %v555 = vpop.permute.xlu0 %554
        %558 = vset.pattern.permute.xlu0 0
        %559 = vperm.xlu0 %558, %v248
        %v560 = vpop.permute.xlu0 %559
        %563 = vset.pattern.permute.xlu0 0
        %564 = vperm.xlu0 %563, %v249
        %v565 = vpop.permute.xlu0 %564
        %568 = vset.pattern.permute.xlu0 0
        %569 = vperm.xlu0 %568, %v250
        %v570 = vpop.permute.xlu0 %569
        %573 = vset.pattern.permute.xlu0 0
        %574 = vperm.xlu0 %573, %v251
        %v575 = vpop.permute.xlu0 %574
        %578 = vset.pattern.permute.xlu0 0
        %579 = vperm.xlu0 %578, %v252
        %v580 = vpop.permute.xlu0 %579
        %583 = vset.pattern.permute.xlu0 0
        %584 = vperm.xlu0 %583, %v253
        %v585 = vpop.permute.xlu0 %584
        %588 = vset.pattern.permute.xlu0 0
        %589 = vperm.xlu0 %588, %v254
        %v590 = vpop.permute.xlu0 %589
        %593 = vset.pattern.permute.xlu0 0
        %594 = vperm.xlu0 %593, %v255
        %v595 = vpop.permute.xlu0 %594
        %598 = vset.pattern.permute.xlu0 0
        %599 = vperm.xlu0 %598, %v256
        %v600 = vpop.permute.xlu0 %599
        %603 = vset.pattern.permute.xlu0 0
        %604 = vperm.xlu0 %603, %v257
        %v605 = vpop.permute.xlu0 %604
        %608 = vset.pattern.permute.xlu0 0
        %609 = vperm.xlu0 %608, %v258
        %v610 = vpop.permute.xlu0 %609
        %613 = vset.pattern.permute.xlu0 0
        %614 = vperm.xlu0 %613, %v259
        %v615 = vpop.permute.xlu0 %614
        %618 = vset.pattern.permute.xlu0 0
        %619 = vperm.xlu0 %618, %v260
        %v620 = vpop.permute.xlu0 %619
        %623 = vset.pattern.permute.xlu0 0
        %624 = vperm.xlu0 %623, %v261
        %v625 = vpop.permute.xlu0 %624
        %628 = vset.pattern.permute.xlu0 0
        %629 = vperm.xlu0 %628, %v262
        %v630 = vpop.permute.xlu0 %629
        %633 = vset.pattern.permute.xlu0 0
        %634 = vperm.xlu0 %633, %v263
        %v635 = vpop.permute.xlu0 %634
        %638 = vset.pattern.permute.xlu0 0
        %639 = vperm.xlu0 %638, %v264
        %v640 = vpop.permute.xlu0 %639
        %643 = vset.pattern.permute.xlu0 0
        %644 = vperm.xlu0 %643, %v265
        %v645 = vpop.permute.xlu0 %644
        %648 = vset.pattern.permute.xlu0 0
        %649 = vperm.xlu0 %648, %v266
        %v650 = vpop.permute.xlu0 %649
        %653 = vset.pattern.permute.xlu0 0
        %654 = vperm.xlu0 %653, %v267
        %v655 = vpop.permute.xlu0 %654
        %vm657 = vcmp.le.f32.partialorder %v429, %v500
        %vm658 = vcmp.le.f32.partialorder %v430, %v500
        %vm659 = vcmp.le.f32.partialorder %v429, %v505
        %vm660 = vcmp.le.f32.partialorder %v430, %v505
        %vm661 = vcmp.le.f32.partialorder %v429, %v510
        %vm662 = vcmp.le.f32.partialorder %v430, %v510
        %vm663 = vcmp.le.f32.partialorder %v429, %v515
        %vm664 = vcmp.le.f32.partialorder %v430, %v515
        %vm665 = vcmp.le.f32.partialorder %v429, %v520
        %vm666 = vcmp.le.f32.partialorder %v430, %v520
        %vm667 = vcmp.le.f32.partialorder %v429, %v525
        %vm668 = vcmp.le.f32.partialorder %v430, %v525
        %vm669 = vcmp.le.f32.partialorder %v429, %v530
        %vm670 = vcmp.le.f32.partialorder %v430, %v530
        %vm671 = vcmp.le.f32.partialorder %v429, %v535
        %vm672 = vcmp.le.f32.partialorder %v430, %v535
        %vm673 = vcmp.le.f32.partialorder %v429, %v540
        %vm674 = vcmp.le.f32.partialorder %v430, %v540
        %vm675 = vcmp.le.f32.partialorder %v429, %v545
        %vm676 = vcmp.le.f32.partialorder %v430, %v545
        %vm677 = vcmp.le.f32.partialorder %v429, %v550
        %vm678 = vcmp.le.f32.partialorder %v430, %v550
        %vm679 = vcmp.le.f32.partialorder %v429, %v555
        %vm680 = vcmp.le.f32.partialorder %v430, %v555
        %vm681 = vcmp.le.f32.partialorder %v429, %v560
        %vm682 = vcmp.le.f32.partialorder %v430, %v560
        %vm683 = vcmp.le.f32.partialorder %v429, %v565
        %vm684 = vcmp.le.f32.partialorder %v430, %v565
        %vm685 = vcmp.le.f32.partialorder %v429, %v570
        %vm686 = vcmp.le.f32.partialorder %v430, %v570
        %vm687 = vcmp.le.f32.partialorder %v429, %v575
        %vm688 = vcmp.le.f32.partialorder %v430, %v575
        %vm689 = vcmp.le.f32.partialorder %v429, %v580
        %vm690 = vcmp.le.f32.partialorder %v430, %v580
        %vm691 = vcmp.le.f32.partialorder %v429, %v585
        %vm692 = vcmp.le.f32.partialorder %v430, %v585
        %vm693 = vcmp.le.f32.partialorder %v429, %v590
        %vm694 = vcmp.le.f32.partialorder %v430, %v590
        %vm695 = vcmp.le.f32.partialorder %v429, %v595
        %vm696 = vcmp.le.f32.partialorder %v430, %v595
        %vm697 = vcmp.le.f32.partialorder %v429, %v600
        %vm698 = vcmp.le.f32.partialorder %v430, %v600
        %vm699 = vcmp.le.f32.partialorder %v429, %v605
        %vm700 = vcmp.le.f32.partialorder %v430, %v605
        %vm701 = vcmp.le.f32.partialorder %v429, %v610
        %vm702 = vcmp.le.f32.partialorder %v430, %v610
        %vm703 = vcmp.le.f32.partialorder %v429, %v615
        %vm704 = vcmp.le.f32.partialorder %v430, %v615
        %vm705 = vcmp.le.f32.partialorder %v429, %v620
        %vm706 = vcmp.le.f32.partialorder %v430, %v620
        %vm707 = vcmp.le.f32.partialorder %v429, %v625
        %vm708 = vcmp.le.f32.partialorder %v430, %v625
        %vm709 = vcmp.le.f32.partialorder %v429, %v630
        %vm710 = vcmp.le.f32.partialorder %v430, %v630
        %vm711 = vcmp.le.f32.partialorder %v429, %v635
        %vm712 = vcmp.le.f32.partialorder %v430, %v635
        %vm713 = vcmp.le.f32.partialorder %v429, %v640
        %vm714 = vcmp.le.f32.partialorder %v430, %v640
        %vm715 = vcmp.le.f32.partialorder %v429, %v645
        %vm716 = vcmp.le.f32.partialorder %v430, %v645
        %vm717 = vcmp.le.f32.partialorder %v429, %v650
        %vm718 = vcmp.le.f32.partialorder %v430, %v650
        %vm719 = vcmp.le.f32.partialorder %v429, %v655
        %vm720 = vcmp.le.f32.partialorder %v430, %v655
        %vm721 = vmand %vm433, %vm657
        %vm722 = vmand %vm434, %vm658
        %vm723 = vmand %vm435, %vm659
        %vm724 = vmand %vm436, %vm660
        %vm725 = vmand %vm437, %vm661
        %vm726 = vmand %vm438, %vm662
        %vm727 = vmand %vm439, %vm663
        %vm728 = vmand %vm440, %vm664
        %vm729 = vmand %vm441, %vm665
        %vm730 = vmand %vm442, %vm666
        %vm731 = vmand %vm443, %vm667
        %vm732 = vmand %vm444, %vm668
        %vm733 = vmand %vm445, %vm669
        %vm734 = vmand %vm446, %vm670
        %vm735 = vmand %vm447, %vm671
        %vm736 = vmand %vm448, %vm672
        %vm737 = vmand %vm449, %vm673
        %vm738 = vmand %vm450, %vm674
        %vm739 = vmand %vm451, %vm675
        %vm740 = vmand %vm452, %vm676
        %vm741 = vmand %vm453, %vm677
        %vm742 = vmand %vm454, %vm678
        %vm743 = vmand %vm455, %vm679
        %vm744 = vmand %vm456, %vm680
        %vm745 = vmand %vm457, %vm681
        %vm746 = vmand %vm458, %vm682
        %vm747 = vmand %vm459, %vm683
        %vm748 = vmand %vm460, %vm684
        %vm749 = vmand %vm461, %vm685
        %vm750 = vmand %vm462, %vm686
        %vm751 = vmand %vm463, %vm687
        %vm752 = vmand %vm464, %vm688
        %vm753 = vmand %vm465, %vm689
        %vm754 = vmand %vm466, %vm690
        %vm755 = vmand %vm467, %vm691
        %vm756 = vmand %vm468, %vm692
        %vm757 = vmand %vm469, %vm693
        %vm758 = vmand %vm470, %vm694
        %vm759 = vmand %vm471, %vm695
        %vm760 = vmand %vm472, %vm696
        %vm761 = vmand %vm473, %vm697
        %vm762 = vmand %vm474, %vm698
        %vm763 = vmand %vm475, %vm699
        %vm764 = vmand %vm476, %vm700
        %vm765 = vmand %vm477, %vm701
        %vm766 = vmand %vm478, %vm702
        %vm767 = vmand %vm479, %vm703
        %vm768 = vmand %vm480, %vm704
        %vm769 = vmand %vm481, %vm705
        %vm770 = vmand %vm482, %vm706
        %vm771 = vmand %vm483, %vm707
        %vm772 = vmand %vm484, %vm708
        %vm773 = vmand %vm485, %vm709
        %vm774 = vmand %vm486, %vm710
        %vm775 = vmand %vm487, %vm711
        %vm776 = vmand %vm488, %vm712
        %vm777 = vmand %vm489, %vm713
        %vm778 = vmand %vm490, %vm714
        %vm779 = vmand %vm491, %vm715
        %vm780 = vmand %vm492, %vm716
        %vm781 = vmand %vm493, %vm717
        %vm782 = vmand %vm494, %vm718
        %vm783 = vmand %vm495, %vm719
        %vm784 = vmand %vm496, %vm720
        %v785 = vsel %vm721, 1, 0
        %v786 = vsel %vm722, 1, 0
        %v787 = vsel %vm723, 1, 0
        %v788 = vsel %vm724, 1, 0
        %v789 = vsel %vm725, 1, 0
        %v790 = vsel %vm726, 1, 0
        %v791 = vsel %vm727, 1, 0
        %v792 = vsel %vm728, 1, 0
        %v793 = vsel %vm729, 1, 0
        %v794 = vsel %vm730, 1, 0
        %v795 = vsel %vm731, 1, 0
        %v796 = vsel %vm732, 1, 0
        %v797 = vsel %vm733, 1, 0
        %v798 = vsel %vm734, 1, 0
        %v799 = vsel %vm735, 1, 0
        %v800 = vsel %vm736, 1, 0
        %v801 = vsel %vm737, 1, 0
        %v802 = vsel %vm738, 1, 0
        %v803 = vsel %vm739, 1, 0
        %v804 = vsel %vm740, 1, 0
        %v805 = vsel %vm741, 1, 0
        %v806 = vsel %vm742, 1, 0
        %v807 = vsel %vm743, 1, 0
        %v808 = vsel %vm744, 1, 0
        %v809 = vsel %vm745, 1, 0
        %v810 = vsel %vm746, 1, 0
        %v811 = vsel %vm747, 1, 0
        %v812 = vsel %vm748, 1, 0
        %v813 = vsel %vm749, 1, 0
        %v814 = vsel %vm750, 1, 0
        %v815 = vsel %vm751, 1, 0
        %v816 = vsel %vm752, 1, 0
        %v817 = vsel %vm753, 1, 0
        %v818 = vsel %vm754, 1, 0
        %v819 = vsel %vm755, 1, 0
        %v820 = vsel %vm756, 1, 0
        %v821 = vsel %vm757, 1, 0
        %v822 = vsel %vm758, 1, 0
        %v823 = vsel %vm759, 1, 0
        %v824 = vsel %vm760, 1, 0
        %v825 = vsel %vm761, 1, 0
        %v826 = vsel %vm762, 1, 0
        %v827 = vsel %vm763, 1, 0
        %v828 = vsel %vm764, 1, 0
        %v829 = vsel %vm765, 1, 0
        %v830 = vsel %vm766, 1, 0
        %v831 = vsel %vm767, 1, 0
        %v832 = vsel %vm768, 1, 0
        %v833 = vsel %vm769, 1, 0
        %v834 = vsel %vm770, 1, 0
        %v835 = vsel %vm771, 1, 0
        %v836 = vsel %vm772, 1, 0
        %v837 = vsel %vm773, 1, 0
        %v838 = vsel %vm774, 1, 0
        %v839 = vsel %vm775, 1, 0
        %v840 = vsel %vm776, 1, 0
        %v841 = vsel %vm777, 1, 0
        %v842 = vsel %vm778, 1, 0
        %v843 = vsel %vm779, 1, 0
        %v844 = vsel %vm780, 1, 0
        %v845 = vsel %vm781, 1, 0
        %v846 = vsel %vm782, 1, 0
        %v847 = vsel %vm783, 1, 0
        %v848 = vsel %vm784, 1, 0
        %v849 = vcvt.s32.f32 %v785
        %v850 = vcvt.s32.f32 %v786
        %v851 = vcvt.s32.f32 %v787
        %v852 = vcvt.s32.f32 %v788
        %v853 = vcvt.s32.f32 %v789
        %v854 = vcvt.s32.f32 %v790
        %v855 = vcvt.s32.f32 %v791
        %v856 = vcvt.s32.f32 %v792
        %v857 = vcvt.s32.f32 %v793
        %v858 = vcvt.s32.f32 %v794
        %v859 = vcvt.s32.f32 %v795
        %v860 = vcvt.s32.f32 %v796
        %v861 = vcvt.s32.f32 %v797
        %v862 = vcvt.s32.f32 %v798
        %v863 = vcvt.s32.f32 %v799
        %v864 = vcvt.s32.f32 %v800
        %v865 = vcvt.s32.f32 %v801
        %v866 = vcvt.s32.f32 %v802
        %v867 = vcvt.s32.f32 %v803
        %v868 = vcvt.s32.f32 %v804
        %v869 = vcvt.s32.f32 %v805
        %v870 = vcvt.s32.f32 %v806
        %v871 = vcvt.s32.f32 %v807
        %v872 = vcvt.s32.f32 %v808
        %v873 = vcvt.s32.f32 %v809
        %v874 = vcvt.s32.f32 %v810
        %v875 = vcvt.s32.f32 %v811
        %v876 = vcvt.s32.f32 %v812
        %v877 = vcvt.s32.f32 %v813
        %v878 = vcvt.s32.f32 %v814
        %v879 = vcvt.s32.f32 %v815
        %v880 = vcvt.s32.f32 %v816
        %v881 = vcvt.s32.f32 %v817
        %v882 = vcvt.s32.f32 %v818
        %v883 = vcvt.s32.f32 %v819
        %v884 = vcvt.s32.f32 %v820
        %v885 = vcvt.s32.f32 %v821
        %v886 = vcvt.s32.f32 %v822
        %v887 = vcvt.s32.f32 %v823
        %v888 = vcvt.s32.f32 %v824
        %v889 = vcvt.s32.f32 %v825
        %v890 = vcvt.s32.f32 %v826
        %v891 = vcvt.s32.f32 %v827
        %v892 = vcvt.s32.f32 %v828
        %v893 = vcvt.s32.f32 %v829
        %v894 = vcvt.s32.f32 %v830
        %v895 = vcvt.s32.f32 %v831
        %v896 = vcvt.s32.f32 %v832
        %v897 = vcvt.s32.f32 %v833
        %v898 = vcvt.s32.f32 %v834
        %v899 = vcvt.s32.f32 %v835
        %v900 = vcvt.s32.f32 %v836
        %v901 = vcvt.s32.f32 %v837
        %v902 = vcvt.s32.f32 %v838
        %v903 = vcvt.s32.f32 %v839
        %v904 = vcvt.s32.f32 %v840
        %v905 = vcvt.s32.f32 %v841
        %v906 = vcvt.s32.f32 %v842
        %v907 = vcvt.s32.f32 %v843
        %v908 = vcvt.s32.f32 %v844
        %v909 = vcvt.s32.f32 %v845
        %v910 = vcvt.s32.f32 %v846
        %v911 = vcvt.s32.f32 %v847
        %v912 = vcvt.s32.f32 %v848
        %v913 = vld [vmem:[%s3] sm:$0xff]
        %v914 = vld [vmem:[%s3 + $0x8] sm:$0xff]
        %v915 = vld [vmem:[%s3 + $0x10] sm:$0xff]
        %v916 = vld [vmem:[%s3 + $0x18] sm:$0xff]
        %v917 = vld [vmem:[%s3 + $0x20] sm:$0xff]
        %v918 = vld [vmem:[%s3 + $0x28] sm:$0xff]
        %v919 = vld [vmem:[%s3 + $0x30] sm:$0xff]
        %v920 = vld [vmem:[%s3 + $0x38] sm:$0xff]
        %v921 = vand.u32 %v879, 4294901760
        %922 = vmatpush.msra.mxu0 %v921
        %v923 = vand.u32 %v877, 4294901760
        %924 = vmatpush.msra.mxu0 %v923
        %v925 = vand.u32 %v875, 4294901760
        %926 = vmatpush.msra.mxu0 %v925
        %v927 = vand.u32 %v873, 4294901760
        %928 = vmatpush.msra.mxu0 %v927
        %v929 = vand.u32 %v871, 4294901760
        %930 = vmatpush.msra.mxu0 %v929
        %v931 = vand.u32 %v869, 4294901760
        %932 = vmatpush.msra.mxu0 %v931
        %v933 = vand.u32 %v867, 4294901760
        %934 = vmatpush.msra.mxu0 %v933
        %v935 = vand.u32 %v865, 4294901760
        %936 = vmatpush.msra.mxu0 %v935
        %v937 = vand.u32 %v863, 4294901760
        %938 = vmatpush.msra.mxu0 %v937
        %v939 = vand.u32 %v861, 4294901760
        %940 = vmatpush.msra.mxu0 %v939
        %v941 = vand.u32 %v859, 4294901760
        %942 = vmatpush.msra.mxu0 %v941
        %v943 = vand.u32 %v857, 4294901760
        %944 = vmatpush.msra.mxu0 %v943
        %v945 = vand.u32 %v855, 4294901760
        %946 = vmatpush.msra.mxu0 %v945
        %v947 = vand.u32 %v853, 4294901760
        %948 = vmatpush.msra.mxu0 %v947
        %v949 = vand.u32 %v851, 4294901760
        %950 = vmatpush.msra.mxu0 %v949
        %v951 = vand.u32 %v849, 4294901760
        %952 = vmatpush.msra.mxu0 %v951
        %v953 = vand.u32 %v913, 4294901760
        %v954 = vsub.f32 %v913, %v953
        %v955 = vand.u32 %v954, 4294901760
        %v956 = vsub.f32 %v954, %v955
        %v957 = vand.u32 %v956, 4294901760
        %958 = vmatmul.f32.gmra.mxu0 %v957
        %v959 = vpop.f32.mrf.mxu0
        %v960 = vadd.f32 0.0, %v959
        %v961 = vand.u32 %v915, 4294901760
        %v962 = vsub.f32 %v915, %v961
        %v963 = vand.u32 %v962, 4294901760
        %v964 = vsub.f32 %v962, %v963
        %v965 = vand.u32 %v964, 4294901760
        %966 = vmatmul.f32.gmra.mxu0 %v965
        %v967 = vpop.f32.mrf.mxu0
        %v968 = vadd.f32 0.0, %v967
        %v969 = vand.u32 %v917, 4294901760
        %v970 = vsub.f32 %v917, %v969
        %v971 = vand.u32 %v970, 4294901760
        %v972 = vsub.f32 %v970, %v971
        %v973 = vand.u32 %v972, 4294901760
        %974 = vmatmul.f32.gmra.mxu0 %v973
        %v975 = vpop.f32.mrf.mxu0
        %v976 = vadd.f32 0.0, %v975
        %v977 = vand.u32 %v919, 4294901760
        %v978 = vsub.f32 %v919, %v977
        %v979 = vand.u32 %v978, 4294901760
        %v980 = vsub.f32 %v978, %v979
        %v981 = vand.u32 %v980, 4294901760
        %982 = vmatmul.f32.gmra.mxu0 %v981
        %v983 = vpop.f32.mrf.mxu0
        %v984 = vadd.f32 0.0, %v983
        %985 = vdwg.mxu0
        %v986 = vand.u32 %v879, 4294901760
        %v987 = vsub.f32 %v879, %v986
        %v988 = vand.u32 %v987, 4294901760
        %v989 = vsub.f32 %v987, %v988
        %v990 = vand.u32 %v989, 4294901760
        %991 = vmatpush.msra.mxu0 %v990
        %v992 = vand.u32 %v877, 4294901760
        %v993 = vsub.f32 %v877, %v992
        %v994 = vand.u32 %v993, 4294901760
        %v995 = vsub.f32 %v993, %v994
        %v996 = vand.u32 %v995, 4294901760
        %997 = vmatpush.msra.mxu0 %v996
        %v998 = vand.u32 %v875, 4294901760
        %v999 = vsub.f32 %v875, %v998
        %v1000 = vand.u32 %v999, 4294901760
        %v1001 = vsub.f32 %v999, %v1000
        %v1002 = vand.u32 %v1001, 4294901760
        %1003 = vmatpush.msra.mxu0 %v1002
        %v1004 = vand.u32 %v873, 4294901760
        %v1005 = vsub.f32 %v873, %v1004
        %v1006 = vand.u32 %v1005, 4294901760
        %v1007 = vsub.f32 %v1005, %v1006
        %v1008 = vand.u32 %v1007, 4294901760
        %1009 = vmatpush.msra.mxu0 %v1008
        %v1010 = vand.u32 %v871, 4294901760
        %v1011 = vsub.f32 %v871, %v1010
        %v1012 = vand.u32 %v1011, 4294901760
        %v1013 = vsub.f32 %v1011, %v1012
        %v1014 = vand.u32 %v1013, 4294901760
        %1015 = vmatpush.msra.mxu0 %v1014
        %v1016 = vand.u32 %v869, 4294901760
        %v1017 = vsub.f32 %v869, %v1016
        %v1018 = vand.u32 %v1017, 4294901760
        %v1019 = vsub.f32 %v1017, %v1018
        %v1020 = vand.u32 %v1019, 4294901760
        %1021 = vmatpush.msra.mxu0 %v1020
        %v1022 = vand.u32 %v867, 4294901760
        %v1023 = vsub.f32 %v867, %v1022
        %v1024 = vand.u32 %v1023, 4294901760
        %v1025 = vsub.f32 %v1023, %v1024
        %v1026 = vand.u32 %v1025, 4294901760
        %1027 = vmatpush.msra.mxu0 %v1026
        %v1028 = vand.u32 %v865, 4294901760
        %v1029 = vsub.f32 %v865, %v1028
        %v1030 = vand.u32 %v1029, 4294901760
        %v1031 = vsub.f32 %v1029, %v1030
        %v1032 = vand.u32 %v1031, 4294901760
        %1033 = vmatpush.msra.mxu0 %v1032
        %v1034 = vand.u32 %v863, 4294901760
        %v1035 = vsub.f32 %v863, %v1034
        %v1036 = vand.u32 %v1035, 4294901760
        %v1037 = vsub.f32 %v1035, %v1036
        %v1038 = vand.u32 %v1037, 4294901760
        %1039 = vmatpush.msra.mxu0 %v1038
        %v1040 = vand.u32 %v861, 4294901760
        %v1041 = vsub.f32 %v861, %v1040
        %v1042 = vand.u32 %v1041, 4294901760
        %v1043 = vsub.f32 %v1041, %v1042
        %v1044 = vand.u32 %v1043, 4294901760
        %1045 = vmatpush.msra.mxu0 %v1044
        %v1046 = vand.u32 %v859, 4294901760
        %v1047 = vsub.f32 %v859, %v1046
        %v1048 = vand.u32 %v1047, 4294901760
        %v1049 = vsub.f32 %v1047, %v1048
        %v1050 = vand.u32 %v1049, 4294901760
        %1051 = vmatpush.msra.mxu0 %v1050
        %v1052 = vand.u32 %v857, 4294901760
        %v1053 = vsub.f32 %v857, %v1052
        %v1054 = vand.u32 %v1053, 4294901760
        %v1055 = vsub.f32 %v1053, %v1054
        %v1056 = vand.u32 %v1055, 4294901760
        %1057 = vmatpush.msra.mxu0 %v1056
        %v1058 = vand.u32 %v855, 4294901760
        %v1059 = vsub.f32 %v855, %v1058
        %v1060 = vand.u32 %v1059, 4294901760
        %v1061 = vsub.f32 %v1059, %v1060
        %v1062 = vand.u32 %v1061, 4294901760
        %1063 = vmatpush.msra.mxu0 %v1062
        %v1064 = vand.u32 %v853, 4294901760
        %v1065 = vsub.f32 %v853, %v1064
        %v1066 = vand.u32 %v1065, 4294901760
        %v1067 = vsub.f32 %v1065, %v1066
        %v1068 = vand.u32 %v1067, 4294901760
        %1069 = vmatpush.msra.mxu0 %v1068
        %v1070 = vand.u32 %v851, 4294901760
        %v1071 = vsub.f32 %v851, %v1070
        %v1072 = vand.u32 %v1071, 4294901760
        %v1073 = vsub.f32 %v1071, %v1072
        %v1074 = vand.u32 %v1073, 4294901760
        %1075 = vmatpush.msra.mxu0 %v1074
        %v1076 = vand.u32 %v849, 4294901760
        %v1077 = vsub.f32 %v849, %v1076
        %v1078 = vand.u32 %v1077, 4294901760
        %v1079 = vsub.f32 %v1077, %v1078
        %v1080 = vand.u32 %v1079, 4294901760
        %1081 = vmatpush.msra.mxu0 %v1080
        %v1082 = vand.u32 %v913, 4294901760
        %1083 = vmatmul.f32.gmra.mxu0 %v1082
        %v1084 = vpop.f32.mrf.mxu0
        %v1085 = vadd.f32 %v960, %v1084
        %v1086 = vand.u32 %v915, 4294901760
        %1087 = vmatmul.f32.gmra.mxu0 %v1086
        %v1088 = vpop.f32.mrf.mxu0
        %v1089 = vadd.f32 %v968, %v1088
        %v1090 = vand.u32 %v917, 4294901760
        %1091 = vmatmul.f32.gmra.mxu0 %v1090
        %v1092 = vpop.f32.mrf.mxu0
        %v1093 = vadd.f32 %v976, %v1092
        %v1094 = vand.u32 %v919, 4294901760
        %1095 = vmatmul.f32.gmra.mxu0 %v1094
        %v1096 = vpop.f32.mrf.mxu0
        %v1097 = vadd.f32 %v984, %v1096
        %1098 = vdwg.mxu0
        %v1099 = vand.u32 %v879, 4294901760
        %v1100 = vsub.f32 %v879, %v1099
        %1101 = vmatpush.msra.mxu0 %v1100
        %v1102 = vand.u32 %v877, 4294901760
        %v1103 = vsub.f32 %v877, %v1102
        %1104 = vmatpush.msra.mxu0 %v1103
        %v1105 = vand.u32 %v875, 4294901760
        %v1106 = vsub.f32 %v875, %v1105
        %1107 = vmatpush.msra.mxu0 %v1106
        %v1108 = vand.u32 %v873, 4294901760
        %v1109 = vsub.f32 %v873, %v1108
        %1110 = vmatpush.msra.mxu0 %v1109
        %v1111 = vand.u32 %v871, 4294901760
        %v1112 = vsub.f32 %v871, %v1111
        %1113 = vmatpush.msra.mxu0 %v1112
        %v1114 = vand.u32 %v869, 4294901760
        %v1115 = vsub.f32 %v869, %v1114
        %1116 = vmatpush.msra.mxu0 %v1115
        %v1117 = vand.u32 %v867, 4294901760
        %v1118 = vsub.f32 %v867, %v1117
        %1119 = vmatpush.msra.mxu0 %v1118
        %v1120 = vand.u32 %v865, 4294901760
        %v1121 = vsub.f32 %v865, %v1120
        %1122 = vmatpush.msra.mxu0 %v1121
        %v1123 = vand.u32 %v863, 4294901760
        %v1124 = vsub.f32 %v863, %v1123
        %1125 = vmatpush.msra.mxu0 %v1124
        %v1126 = vand.u32 %v861, 4294901760
        %v1127 = vsub.f32 %v861, %v1126
        %1128 = vmatpush.msra.mxu0 %v1127
        %v1129 = vand.u32 %v859, 4294901760
        %v1130 = vsub.f32 %v859, %v1129
        %1131 = vmatpush.msra.mxu0 %v1130
        %v1132 = vand.u32 %v857, 4294901760
        %v1133 = vsub.f32 %v857, %v1132
        %1134 = vmatpush.msra.mxu0 %v1133
        %v1135 = vand.u32 %v855, 4294901760
        %v1136 = vsub.f32 %v855, %v1135
        %1137 = vmatpush.msra.mxu0 %v1136
        %v1138 = vand.u32 %v853, 4294901760
        %v1139 = vsub.f32 %v853, %v1138
        %1140 = vmatpush.msra.mxu0 %v1139
        %v1141 = vand.u32 %v851, 4294901760
        %v1142 = vsub.f32 %v851, %v1141
        %1143 = vmatpush.msra.mxu0 %v1142
        %v1144 = vand.u32 %v849, 4294901760
        %v1145 = vsub.f32 %v849, %v1144
        %1146 = vmatpush.msra.mxu0 %v1145
        %v1147 = vand.u32 %v913, 4294901760
        %v1148 = vsub.f32 %v913, %v1147
        %1149 = vmatmul.f32.gmra.mxu0 %v1148
        %v1150 = vpop.f32.mrf.mxu0
        %v1151 = vadd.f32 %v1085, %v1150
        %v1152 = vand.u32 %v915, 4294901760
        %v1153 = vsub.f32 %v915, %v1152
        %1154 = vmatmul.f32.gmra.mxu0 %v1153
        %v1155 = vpop.f32.mrf.mxu0
        %v1156 = vadd.f32 %v1089, %v1155
        %v1157 = vand.u32 %v917, 4294901760
        %v1158 = vsub.f32 %v917, %v1157
        %1159 = vmatmul.f32.gmra.mxu0 %v1158
        %v1160 = vpop.f32.mrf.mxu0
        %v1161 = vadd.f32 %v1093, %v1160
        %v1162 = vand.u32 %v919, 4294901760
        %v1163 = vsub.f32 %v919, %v1162
        %1164 = vmatmul.f32.gmra.mxu0 %v1163
        %v1165 = vpop.f32.mrf.mxu0
        %v1166 = vadd.f32 %v1097, %v1165
        %1167 = vdwg.mxu0
        %v1168 = vand.u32 %v879, 4294901760
        %1169 = vmatpush.msra.mxu0 %v1168
        %v1170 = vand.u32 %v877, 4294901760
        %1171 = vmatpush.msra.mxu0 %v1170
        %v1172 = vand.u32 %v875, 4294901760
        %1173 = vmatpush.msra.mxu0 %v1172
        %v1174 = vand.u32 %v873, 4294901760
        %1175 = vmatpush.msra.mxu0 %v1174
        %v1176 = vand.u32 %v871, 4294901760
        %1177 = vmatpush.msra.mxu0 %v1176
        %v1178 = vand.u32 %v869, 4294901760
        %1179 = vmatpush.msra.mxu0 %v1178
        %v1180 = vand.u32 %v867, 4294901760
        %1181 = vmatpush.msra.mxu0 %v1180
        %v1182 = vand.u32 %v865, 4294901760
        %1183 = vmatpush.msra.mxu0 %v1182
        %v1184 = vand.u32 %v863, 4294901760
        %1185 = vmatpush.msra.mxu0 %v1184
        %v1186 = vand.u32 %v861, 4294901760
        %1187 = vmatpush.msra.mxu0 %v1186
        %v1188 = vand.u32 %v859, 4294901760
        %1189 = vmatpush.msra.mxu0 %v1188
        %v1190 = vand.u32 %v857, 4294901760
        %1191 = vmatpush.msra.mxu0 %v1190
        %v1192 = vand.u32 %v855, 4294901760
        %1193 = vmatpush.msra.mxu0 %v1192
        %v1194 = vand.u32 %v853, 4294901760
        %1195 = vmatpush.msra.mxu0 %v1194
        %v1196 = vand.u32 %v851, 4294901760
        %1197 = vmatpush.msra.mxu0 %v1196
        %v1198 = vand.u32 %v849, 4294901760
        %1199 = vmatpush.msra.mxu0 %v1198
        %v1200 = vand.u32 %v913, 4294901760
        %v1201 = vsub.f32 %v913, %v1200
        %v1202 = vand.u32 %v1201, 4294901760
        %1203 = vmatmul.f32.gmra.mxu0 %v1202
        %v1204 = vpop.f32.mrf.mxu0
        %v1205 = vadd.f32 %v1151, %v1204
        %v1206 = vand.u32 %v915, 4294901760
        %v1207 = vsub.f32 %v915, %v1206
        %v1208 = vand.u32 %v1207, 4294901760
        %1209 = vmatmul.f32.gmra.mxu0 %v1208
        %v1210 = vpop.f32.mrf.mxu0
        %v1211 = vadd.f32 %v1156, %v1210
        %v1212 = vand.u32 %v917, 4294901760
        %v1213 = vsub.f32 %v917, %v1212
        %v1214 = vand.u32 %v1213, 4294901760
        %1215 = vmatmul.f32.gmra.mxu0 %v1214
        %v1216 = vpop.f32.mrf.mxu0
        %v1217 = vadd.f32 %v1161, %v1216
        %v1218 = vand.u32 %v919, 4294901760
        %v1219 = vsub.f32 %v919, %v1218
        %v1220 = vand.u32 %v1219, 4294901760
        %1221 = vmatmul.f32.gmra.mxu0 %v1220
        %v1222 = vpop.f32.mrf.mxu0
        %v1223 = vadd.f32 %v1166, %v1222
        %1224 = vdwg.mxu0
        %v1225 = vand.u32 %v879, 4294901760
        %v1226 = vsub.f32 %v879, %v1225
        %v1227 = vand.u32 %v1226, 4294901760
        %1228 = vmatpush.msra.mxu0 %v1227
        %v1229 = vand.u32 %v877, 4294901760
        %v1230 = vsub.f32 %v877, %v1229
        %v1231 = vand.u32 %v1230, 4294901760
        %1232 = vmatpush.msra.mxu0 %v1231
        %v1233 = vand.u32 %v875, 4294901760
        %v1234 = vsub.f32 %v875, %v1233
        %v1235 = vand.u32 %v1234, 4294901760
        %1236 = vmatpush.msra.mxu0 %v1235
        %v1237 = vand.u32 %v873, 4294901760
        %v1238 = vsub.f32 %v873, %v1237
        %v1239 = vand.u32 %v1238, 4294901760
        %1240 = vmatpush.msra.mxu0 %v1239
        %v1241 = vand.u32 %v871, 4294901760
        %v1242 = vsub.f32 %v871, %v1241
        %v1243 = vand.u32 %v1242, 4294901760
        %1244 = vmatpush.msra.mxu0 %v1243
        %v1245 = vand.u32 %v869, 4294901760
        %v1246 = vsub.f32 %v869, %v1245
        %v1247 = vand.u32 %v1246, 4294901760
        %1248 = vmatpush.msra.mxu0 %v1247
        %v1249 = vand.u32 %v867, 4294901760
        %v1250 = vsub.f32 %v867, %v1249
        %v1251 = vand.u32 %v1250, 4294901760
        %1252 = vmatpush.msra.mxu0 %v1251
        %v1253 = vand.u32 %v865, 4294901760
        %v1254 = vsub.f32 %v865, %v1253
        %v1255 = vand.u32 %v1254, 4294901760
        %1256 = vmatpush.msra.mxu0 %v1255
        %v1257 = vand.u32 %v863, 4294901760
        %v1258 = vsub.f32 %v863, %v1257
        %v1259 = vand.u32 %v1258, 4294901760
        %1260 = vmatpush.msra.mxu0 %v1259
        %v1261 = vand.u32 %v861, 4294901760
        %v1262 = vsub.f32 %v861, %v1261
        %v1263 = vand.u32 %v1262, 4294901760
        %1264 = vmatpush.msra.mxu0 %v1263
        %v1265 = vand.u32 %v859, 4294901760
        %v1266 = vsub.f32 %v859, %v1265
        %v1267 = vand.u32 %v1266, 4294901760
        %1268 = vmatpush.msra.mxu0 %v1267
        %v1269 = vand.u32 %v857, 4294901760
        %v1270 = vsub.f32 %v857, %v1269
        %v1271 = vand.u32 %v1270, 4294901760
        %1272 = vmatpush.msra.mxu0 %v1271
        %v1273 = vand.u32 %v855, 4294901760
        %v1274 = vsub.f32 %v855, %v1273
        %v1275 = vand.u32 %v1274, 4294901760
        %1276 = vmatpush.msra.mxu0 %v1275
        %v1277 = vand.u32 %v853, 4294901760
        %v1278 = vsub.f32 %v853, %v1277
        %v1279 = vand.u32 %v1278, 4294901760
        %1280 = vmatpush.msra.mxu0 %v1279
        %v1281 = vand.u32 %v851, 4294901760
        %v1282 = vsub.f32 %v851, %v1281
        %v1283 = vand.u32 %v1282, 4294901760
        %1284 = vmatpush.msra.mxu0 %v1283
        %v1285 = vand.u32 %v849, 4294901760
        %v1286 = vsub.f32 %v849, %v1285
        %v1287 = vand.u32 %v1286, 4294901760
        %1288 = vmatpush.msra.mxu0 %v1287
        %v1289 = vand.u32 %v913, 4294901760
        %1290 = vmatmul.f32.gmra.mxu0 %v1289
        %v1291 = vpop.f32.mrf.mxu0
        %v1292 = vadd.f32 %v1205, %v1291
        %v1293 = vand.u32 %v915, 4294901760
        %1294 = vmatmul.f32.gmra.mxu0 %v1293
        %v1295 = vpop.f32.mrf.mxu0
        %v1296 = vadd.f32 %v1211, %v1295
        %v1297 = vand.u32 %v917, 4294901760
        %1298 = vmatmul.f32.gmra.mxu0 %v1297
        %v1299 = vpop.f32.mrf.mxu0
        %v1300 = vadd.f32 %v1217, %v1299
        %v1301 = vand.u32 %v919, 4294901760
        %1302 = vmatmul.f32.gmra.mxu0 %v1301
        %v1303 = vpop.f32.mrf.mxu0
        %v1304 = vadd.f32 %v1223, %v1303
        %1305 = vdwg.mxu0
        %v1306 = vand.u32 %v879, 4294901760
        %1307 = vmatpush.msra.mxu0 %v1306
        %v1308 = vand.u32 %v877, 4294901760
        %1309 = vmatpush.msra.mxu0 %v1308
        %v1310 = vand.u32 %v875, 4294901760
        %1311 = vmatpush.msra.mxu0 %v1310
        %v1312 = vand.u32 %v873, 4294901760
        %1313 = vmatpush.msra.mxu0 %v1312
        %v1314 = vand.u32 %v871, 4294901760
        %1315 = vmatpush.msra.mxu0 %v1314
        %v1316 = vand.u32 %v869, 4294901760
        %1317 = vmatpush.msra.mxu0 %v1316
        %v1318 = vand.u32 %v867, 4294901760
        %1319 = vmatpush.msra.mxu0 %v1318
        %v1320 = vand.u32 %v865, 4294901760
        %1321 = vmatpush.msra.mxu0 %v1320
        %v1322 = vand.u32 %v863, 4294901760
        %1323 = vmatpush.msra.mxu0 %v1322
        %v1324 = vand.u32 %v861, 4294901760
        %1325 = vmatpush.msra.mxu0 %v1324
        %v1326 = vand.u32 %v859, 4294901760
        %1327 = vmatpush.msra.mxu0 %v1326
        %v1328 = vand.u32 %v857, 4294901760
        %1329 = vmatpush.msra.mxu0 %v1328
        %v1330 = vand.u32 %v855, 4294901760
        %1331 = vmatpush.msra.mxu0 %v1330
        %v1332 = vand.u32 %v853, 4294901760
        %1333 = vmatpush.msra.mxu0 %v1332
        %v1334 = vand.u32 %v851, 4294901760
        %1335 = vmatpush.msra.mxu0 %v1334
        %v1336 = vand.u32 %v849, 4294901760
        %1337 = vmatpush.msra.mxu0 %v1336
        %v1338 = vand.u32 %v913, 4294901760
        %1339 = vmatmul.f32.gmra.mxu0 %v1338
        %v1340 = vpop.f32.mrf.mxu0
        %v1341 = vadd.f32 %v1292, %v1340
        %v1342 = vand.u32 %v915, 4294901760
        %1343 = vmatmul.f32.gmra.mxu0 %v1342
        %v1344 = vpop.f32.mrf.mxu0
        %v1345 = vadd.f32 %v1296, %v1344
        %v1346 = vand.u32 %v917, 4294901760
        %1347 = vmatmul.f32.gmra.mxu0 %v1346
        %v1348 = vpop.f32.mrf.mxu0
        %v1349 = vadd.f32 %v1300, %v1348
        %v1350 = vand.u32 %v919, 4294901760
        %1351 = vmatmul.f32.gmra.mxu0 %v1350
        %v1352 = vpop.f32.mrf.mxu0
        %v1353 = vadd.f32 %v1304, %v1352
        %1354 = vdwg.mxu0
        %v1355 = vand.u32 %v911, 4294901760
        %1356 = vmatpush.msra.mxu0 %v1355
        %v1357 = vand.u32 %v909, 4294901760
        %1358 = vmatpush.msra.mxu0 %v1357
        %v1359 = vand.u32 %v907, 4294901760
        %1360 = vmatpush.msra.mxu0 %v1359
        %v1361 = vand.u32 %v905, 4294901760
        %1362 = vmatpush.msra.mxu0 %v1361
        %v1363 = vand.u32 %v903, 4294901760
        %1364 = vmatpush.msra.mxu0 %v1363
        %v1365 = vand.u32 %v901, 4294901760
        %1366 = vmatpush.msra.mxu0 %v1365
        %v1367 = vand.u32 %v899, 4294901760
        %1368 = vmatpush.msra.mxu0 %v1367
        %v1369 = vand.u32 %v897, 4294901760
        %1370 = vmatpush.msra.mxu0 %v1369
        %v1371 = vand.u32 %v895, 4294901760
        %1372 = vmatpush.msra.mxu0 %v1371
        %v1373 = vand.u32 %v893, 4294901760
        %1374 = vmatpush.msra.mxu0 %v1373
        %v1375 = vand.u32 %v891, 4294901760
        %1376 = vmatpush.msra.mxu0 %v1375
        %v1377 = vand.u32 %v889, 4294901760
        %1378 = vmatpush.msra.mxu0 %v1377
        %v1379 = vand.u32 %v887, 4294901760
        %1380 = vmatpush.msra.mxu0 %v1379
        %v1381 = vand.u32 %v885, 4294901760
        %1382 = vmatpush.msra.mxu0 %v1381
        %v1383 = vand.u32 %v883, 4294901760
        %1384 = vmatpush.msra.mxu0 %v1383
        %v1385 = vand.u32 %v881, 4294901760
        %1386 = vmatpush.msra.mxu0 %v1385
        %v1387 = vand.u32 %v914, 4294901760
        %v1388 = vsub.f32 %v914, %v1387
        %v1389 = vand.u32 %v1388, 4294901760
        %v1390 = vsub.f32 %v1388, %v1389
        %v1391 = vand.u32 %v1390, 4294901760
        %1392 = vmatmul.f32.gmra.mxu0 %v1391
        %v1393 = vpop.f32.mrf.mxu0
        %v1394 = vadd.f32 %v1341, %v1393
        %v1395 = vand.u32 %v916, 4294901760
        %v1396 = vsub.f32 %v916, %v1395
        %v1397 = vand.u32 %v1396, 4294901760
        %v1398 = vsub.f32 %v1396, %v1397
        %v1399 = vand.u32 %v1398, 4294901760
        %1400 = vmatmul.f32.gmra.mxu0 %v1399
        %v1401 = vpop.f32.mrf.mxu0
        %v1402 = vadd.f32 %v1345, %v1401
        %v1403 = vand.u32 %v918, 4294901760
        %v1404 = vsub.f32 %v918, %v1403
        %v1405 = vand.u32 %v1404, 4294901760
        %v1406 = vsub.f32 %v1404, %v1405
        %v1407 = vand.u32 %v1406, 4294901760
        %1408 = vmatmul.f32.gmra.mxu0 %v1407
        %v1409 = vpop.f32.mrf.mxu0
        %v1410 = vadd.f32 %v1349, %v1409
        %v1411 = vand.u32 %v920, 4294901760
        %v1412 = vsub.f32 %v920, %v1411
        %v1413 = vand.u32 %v1412, 4294901760
        %v1414 = vsub.f32 %v1412, %v1413
        %v1415 = vand.u32 %v1414, 4294901760
        %1416 = vmatmul.f32.gmra.mxu0 %v1415
        %v1417 = vpop.f32.mrf.mxu0
        %v1418 = vadd.f32 %v1353, %v1417
        %1419 = vdwg.mxu0
        %v1420 = vand.u32 %v911, 4294901760
        %v1421 = vsub.f32 %v911, %v1420
        %v1422 = vand.u32 %v1421, 4294901760
        %v1423 = vsub.f32 %v1421, %v1422
        %v1424 = vand.u32 %v1423, 4294901760
        %1425 = vmatpush.msra.mxu0 %v1424
        %v1426 = vand.u32 %v909, 4294901760
        %v1427 = vsub.f32 %v909, %v1426
        %v1428 = vand.u32 %v1427, 4294901760
        %v1429 = vsub.f32 %v1427, %v1428
        %v1430 = vand.u32 %v1429, 4294901760
        %1431 = vmatpush.msra.mxu0 %v1430
        %v1432 = vand.u32 %v907, 4294901760
        %v1433 = vsub.f32 %v907, %v1432
        %v1434 = vand.u32 %v1433, 4294901760
        %v1435 = vsub.f32 %v1433, %v1434
        %v1436 = vand.u32 %v1435, 4294901760
        %1437 = vmatpush.msra.mxu0 %v1436
        %v1438 = vand.u32 %v905, 4294901760
        %v1439 = vsub.f32 %v905, %v1438
        %v1440 = vand.u32 %v1439, 4294901760
        %v1441 = vsub.f32 %v1439, %v1440
        %v1442 = vand.u32 %v1441, 4294901760
        %1443 = vmatpush.msra.mxu0 %v1442
        %v1444 = vand.u32 %v903, 4294901760
        %v1445 = vsub.f32 %v903, %v1444
        %v1446 = vand.u32 %v1445, 4294901760
        %v1447 = vsub.f32 %v1445, %v1446
        %v1448 = vand.u32 %v1447, 4294901760
        %1449 = vmatpush.msra.mxu0 %v1448
        %v1450 = vand.u32 %v901, 4294901760
        %v1451 = vsub.f32 %v901, %v1450
        %v1452 = vand.u32 %v1451, 4294901760
        %v1453 = vsub.f32 %v1451, %v1452
        %v1454 = vand.u32 %v1453, 4294901760
        %1455 = vmatpush.msra.mxu0 %v1454
        %v1456 = vand.u32 %v899, 4294901760
        %v1457 = vsub.f32 %v899, %v1456
        %v1458 = vand.u32 %v1457, 4294901760
        %v1459 = vsub.f32 %v1457, %v1458
        %v1460 = vand.u32 %v1459, 4294901760
        %1461 = vmatpush.msra.mxu0 %v1460
        %v1462 = vand.u32 %v897, 4294901760
        %v1463 = vsub.f32 %v897, %v1462
        %v1464 = vand.u32 %v1463, 4294901760
        %v1465 = vsub.f32 %v1463, %v1464
        %v1466 = vand.u32 %v1465, 4294901760
        %1467 = vmatpush.msra.mxu0 %v1466
        %v1468 = vand.u32 %v895, 4294901760
        %v1469 = vsub.f32 %v895, %v1468
        %v1470 = vand.u32 %v1469, 4294901760
        %v1471 = vsub.f32 %v1469, %v1470
        %v1472 = vand.u32 %v1471, 4294901760
        %1473 = vmatpush.msra.mxu0 %v1472
        %v1474 = vand.u32 %v893, 4294901760
        %v1475 = vsub.f32 %v893, %v1474
        %v1476 = vand.u32 %v1475, 4294901760
        %v1477 = vsub.f32 %v1475, %v1476
        %v1478 = vand.u32 %v1477, 4294901760
        %1479 = vmatpush.msra.mxu0 %v1478
        %v1480 = vand.u32 %v891, 4294901760
        %v1481 = vsub.f32 %v891, %v1480
        %v1482 = vand.u32 %v1481, 4294901760
        %v1483 = vsub.f32 %v1481, %v1482
        %v1484 = vand.u32 %v1483, 4294901760
        %1485 = vmatpush.msra.mxu0 %v1484
        %v1486 = vand.u32 %v889, 4294901760
        %v1487 = vsub.f32 %v889, %v1486
        %v1488 = vand.u32 %v1487, 4294901760
        %v1489 = vsub.f32 %v1487, %v1488
        %v1490 = vand.u32 %v1489, 4294901760
        %1491 = vmatpush.msra.mxu0 %v1490
        %v1492 = vand.u32 %v887, 4294901760
        %v1493 = vsub.f32 %v887, %v1492
        %v1494 = vand.u32 %v1493, 4294901760
        %v1495 = vsub.f32 %v1493, %v1494
        %v1496 = vand.u32 %v1495, 4294901760
        %1497 = vmatpush.msra.mxu0 %v1496
        %v1498 = vand.u32 %v885, 4294901760
        %v1499 = vsub.f32 %v885, %v1498
        %v1500 = vand.u32 %v1499, 4294901760
        %v1501 = vsub.f32 %v1499, %v1500
        %v1502 = vand.u32 %v1501, 4294901760
        %1503 = vmatpush.msra.mxu0 %v1502
        %v1504 = vand.u32 %v883, 4294901760
        %v1505 = vsub.f32 %v883, %v1504
        %v1506 = vand.u32 %v1505, 4294901760
        %v1507 = vsub.f32 %v1505, %v1506
        %v1508 = vand.u32 %v1507, 4294901760
        %1509 = vmatpush.msra.mxu0 %v1508
        %v1510 = vand.u32 %v881, 4294901760
        %v1511 = vsub.f32 %v881, %v1510
        %v1512 = vand.u32 %v1511, 4294901760
        %v1513 = vsub.f32 %v1511, %v1512
        %v1514 = vand.u32 %v1513, 4294901760
        %1515 = vmatpush.msra.mxu0 %v1514
        %v1516 = vand.u32 %v914, 4294901760
        %1517 = vmatmul.f32.gmra.mxu0 %v1516
        %v1518 = vpop.f32.mrf.mxu0
        %v1519 = vadd.f32 %v1394, %v1518
        %v1520 = vand.u32 %v916, 4294901760
        %1521 = vmatmul.f32.gmra.mxu0 %v1520
        %v1522 = vpop.f32.mrf.mxu0
        %v1523 = vadd.f32 %v1402, %v1522
        %v1524 = vand.u32 %v918, 4294901760
        %1525 = vmatmul.f32.gmra.mxu0 %v1524
        %v1526 = vpop.f32.mrf.mxu0
        %v1527 = vadd.f32 %v1410, %v1526
        %v1528 = vand.u32 %v920, 4294901760
        %1529 = vmatmul.f32.gmra.mxu0 %v1528
        %v1530 = vpop.f32.mrf.mxu0
        %v1531 = vadd.f32 %v1418, %v1530
        %1532 = vdwg.mxu0
        %v1533 = vand.u32 %v911, 4294901760
        %v1534 = vsub.f32 %v911, %v1533
        %1535 = vmatpush.msra.mxu0 %v1534
        %v1536 = vand.u32 %v909, 4294901760
        %v1537 = vsub.f32 %v909, %v1536
        %1538 = vmatpush.msra.mxu0 %v1537
        %v1539 = vand.u32 %v907, 4294901760
        %v1540 = vsub.f32 %v907, %v1539
        %1541 = vmatpush.msra.mxu0 %v1540
        %v1542 = vand.u32 %v905, 4294901760
        %v1543 = vsub.f32 %v905, %v1542
        %1544 = vmatpush.msra.mxu0 %v1543
        %v1545 = vand.u32 %v903, 4294901760
        %v1546 = vsub.f32 %v903, %v1545
        %1547 = vmatpush.msra.mxu0 %v1546
        %v1548 = vand.u32 %v901, 4294901760
        %v1549 = vsub.f32 %v901, %v1548
        %1550 = vmatpush.msra.mxu0 %v1549
        %v1551 = vand.u32 %v899, 4294901760
        %v1552 = vsub.f32 %v899, %v1551
        %1553 = vmatpush.msra.mxu0 %v1552
        %v1554 = vand.u32 %v897, 4294901760
        %v1555 = vsub.f32 %v897, %v1554
        %1556 = vmatpush.msra.mxu0 %v1555
        %v1557 = vand.u32 %v895, 4294901760
        %v1558 = vsub.f32 %v895, %v1557
        %1559 = vmatpush.msra.mxu0 %v1558
        %v1560 = vand.u32 %v893, 4294901760
        %v1561 = vsub.f32 %v893, %v1560
        %1562 = vmatpush.msra.mxu0 %v1561
        %v1563 = vand.u32 %v891, 4294901760
        %v1564 = vsub.f32 %v891, %v1563
        %1565 = vmatpush.msra.mxu0 %v1564
        %v1566 = vand.u32 %v889, 4294901760
        %v1567 = vsub.f32 %v889, %v1566
        %1568 = vmatpush.msra.mxu0 %v1567
        %v1569 = vand.u32 %v887, 4294901760
        %v1570 = vsub.f32 %v887, %v1569
        %1571 = vmatpush.msra.mxu0 %v1570
        %v1572 = vand.u32 %v885, 4294901760
        %v1573 = vsub.f32 %v885, %v1572
        %1574 = vmatpush.msra.mxu0 %v1573
        %v1575 = vand.u32 %v883, 4294901760
        %v1576 = vsub.f32 %v883, %v1575
        %1577 = vmatpush.msra.mxu0 %v1576
        %v1578 = vand.u32 %v881, 4294901760
        %v1579 = vsub.f32 %v881, %v1578
        %1580 = vmatpush.msra.mxu0 %v1579
        %v1581 = vand.u32 %v914, 4294901760
        %v1582 = vsub.f32 %v914, %v1581
        %1583 = vmatmul.f32.gmra.mxu0 %v1582
        %v1584 = vpop.f32.mrf.mxu0
        %v1585 = vadd.f32 %v1519, %v1584
        %v1586 = vand.u32 %v916, 4294901760
        %v1587 = vsub.f32 %v916, %v1586
        %1588 = vmatmul.f32.gmra.mxu0 %v1587
        %v1589 = vpop.f32.mrf.mxu0
        %v1590 = vadd.f32 %v1523, %v1589
        %v1591 = vand.u32 %v918, 4294901760
        %v1592 = vsub.f32 %v918, %v1591
        %1593 = vmatmul.f32.gmra.mxu0 %v1592
        %v1594 = vpop.f32.mrf.mxu0
        %v1595 = vadd.f32 %v1527, %v1594
        %v1596 = vand.u32 %v920, 4294901760
        %v1597 = vsub.f32 %v920, %v1596
        %1598 = vmatmul.f32.gmra.mxu0 %v1597
        %v1599 = vpop.f32.mrf.mxu0
        %v1600 = vadd.f32 %v1531, %v1599
        %1601 = vdwg.mxu0
        %v1602 = vand.u32 %v911, 4294901760
        %1603 = vmatpush.msra.mxu0 %v1602
        %v1604 = vand.u32 %v909, 4294901760
        %1605 = vmatpush.msra.mxu0 %v1604
        %v1606 = vand.u32 %v907, 4294901760
        %1607 = vmatpush.msra.mxu0 %v1606
        %v1608 = vand.u32 %v905, 4294901760
        %1609 = vmatpush.msra.mxu0 %v1608
        %v1610 = vand.u32 %v903, 4294901760
        %1611 = vmatpush.msra.mxu0 %v1610
        %v1612 = vand.u32 %v901, 4294901760
        %1613 = vmatpush.msra.mxu0 %v1612
        %v1614 = vand.u32 %v899, 4294901760
        %1615 = vmatpush.msra.mxu0 %v1614
        %v1616 = vand.u32 %v897, 4294901760
        %1617 = vmatpush.msra.mxu0 %v1616
        %v1618 = vand.u32 %v895, 4294901760
        %1619 = vmatpush.msra.mxu0 %v1618
        %v1620 = vand.u32 %v893, 4294901760
        %1621 = vmatpush.msra.mxu0 %v1620
        %v1622 = vand.u32 %v891, 4294901760
        %1623 = vmatpush.msra.mxu0 %v1622
        %v1624 = vand.u32 %v889, 4294901760
        %1625 = vmatpush.msra.mxu0 %v1624
        %v1626 = vand.u32 %v887, 4294901760
        %1627 = vmatpush.msra.mxu0 %v1626
        %v1628 = vand.u32 %v885, 4294901760
        %1629 = vmatpush.msra.mxu0 %v1628
        %v1630 = vand.u32 %v883, 4294901760
        %1631 = vmatpush.msra.mxu0 %v1630
        %v1632 = vand.u32 %v881, 4294901760
        %1633 = vmatpush.msra.mxu0 %v1632
        %v1634 = vand.u32 %v914, 4294901760
        %v1635 = vsub.f32 %v914, %v1634
        %v1636 = vand.u32 %v1635, 4294901760
        %1637 = vmatmul.f32.gmra.mxu0 %v1636
        %v1638 = vpop.f32.mrf.mxu0
        %v1639 = vadd.f32 %v1585, %v1638
        %v1640 = vand.u32 %v916, 4294901760
        %v1641 = vsub.f32 %v916, %v1640
        %v1642 = vand.u32 %v1641, 4294901760
        %1643 = vmatmul.f32.gmra.mxu0 %v1642
        %v1644 = vpop.f32.mrf.mxu0
        %v1645 = vadd.f32 %v1590, %v1644
        %v1646 = vand.u32 %v918, 4294901760
        %v1647 = vsub.f32 %v918, %v1646
        %v1648 = vand.u32 %v1647, 4294901760
        %1649 = vmatmul.f32.gmra.mxu0 %v1648
        %v1650 = vpop.f32.mrf.mxu0
        %v1651 = vadd.f32 %v1595, %v1650
        %v1652 = vand.u32 %v920, 4294901760
        %v1653 = vsub.f32 %v920, %v1652
        %v1654 = vand.u32 %v1653, 4294901760
        %1655 = vmatmul.f32.gmra.mxu0 %v1654
        %v1656 = vpop.f32.mrf.mxu0
        %v1657 = vadd.f32 %v1600, %v1656
        %1658 = vdwg.mxu0
        %v1659 = vand.u32 %v911, 4294901760
        %v1660 = vsub.f32 %v911, %v1659
        %v1661 = vand.u32 %v1660, 4294901760
        %1662 = vmatpush.msra.mxu0 %v1661
        %v1663 = vand.u32 %v909, 4294901760
        %v1664 = vsub.f32 %v909, %v1663
        %v1665 = vand.u32 %v1664, 4294901760
        %1666 = vmatpush.msra.mxu0 %v1665
        %v1667 = vand.u32 %v907, 4294901760
        %v1668 = vsub.f32 %v907, %v1667
        %v1669 = vand.u32 %v1668, 4294901760
        %1670 = vmatpush.msra.mxu0 %v1669
        %v1671 = vand.u32 %v905, 4294901760
        %v1672 = vsub.f32 %v905, %v1671
        %v1673 = vand.u32 %v1672, 4294901760
        %1674 = vmatpush.msra.mxu0 %v1673
        %v1675 = vand.u32 %v903, 4294901760
        %v1676 = vsub.f32 %v903, %v1675
        %v1677 = vand.u32 %v1676, 4294901760
        %1678 = vmatpush.msra.mxu0 %v1677
        %v1679 = vand.u32 %v901, 4294901760
        %v1680 = vsub.f32 %v901, %v1679
        %v1681 = vand.u32 %v1680, 4294901760
        %1682 = vmatpush.msra.mxu0 %v1681
        %v1683 = vand.u32 %v899, 4294901760
        %v1684 = vsub.f32 %v899, %v1683
        %v1685 = vand.u32 %v1684, 4294901760
        %1686 = vmatpush.msra.mxu0 %v1685
        %v1687 = vand.u32 %v897, 4294901760
        %v1688 = vsub.f32 %v897, %v1687
        %v1689 = vand.u32 %v1688, 4294901760
        %1690 = vmatpush.msra.mxu0 %v1689
        %v1691 = vand.u32 %v895, 4294901760
        %v1692 = vsub.f32 %v895, %v1691
        %v1693 = vand.u32 %v1692, 4294901760
        %1694 = vmatpush.msra.mxu0 %v1693
        %v1695 = vand.u32 %v893, 4294901760
        %v1696 = vsub.f32 %v893, %v1695
        %v1697 = vand.u32 %v1696, 4294901760
        %1698 = vmatpush.msra.mxu0 %v1697
        %v1699 = vand.u32 %v891, 4294901760
        %v1700 = vsub.f32 %v891, %v1699
        %v1701 = vand.u32 %v1700, 4294901760
        %1702 = vmatpush.msra.mxu0 %v1701
        %v1703 = vand.u32 %v889, 4294901760
        %v1704 = vsub.f32 %v889, %v1703
        %v1705 = vand.u32 %v1704, 4294901760
        %1706 = vmatpush.msra.mxu0 %v1705
        %v1707 = vand.u32 %v887, 4294901760
        %v1708 = vsub.f32 %v887, %v1707
        %v1709 = vand.u32 %v1708, 4294901760
        %1710 = vmatpush.msra.mxu0 %v1709
        %v1711 = vand.u32 %v885, 4294901760
        %v1712 = vsub.f32 %v885, %v1711
        %v1713 = vand.u32 %v1712, 4294901760
        %1714 = vmatpush.msra.mxu0 %v1713
        %v1715 = vand.u32 %v883, 4294901760
        %v1716 = vsub.f32 %v883, %v1715
        %v1717 = vand.u32 %v1716, 4294901760
        %1718 = vmatpush.msra.mxu0 %v1717
        %v1719 = vand.u32 %v881, 4294901760
        %v1720 = vsub.f32 %v881, %v1719
        %v1721 = vand.u32 %v1720, 4294901760
        %1722 = vmatpush.msra.mxu0 %v1721
        %v1723 = vand.u32 %v914, 4294901760
        %1724 = vmatmul.f32.gmra.mxu0 %v1723
        %v1725 = vpop.f32.mrf.mxu0
        %v1726 = vadd.f32 %v1639, %v1725
        %v1727 = vand.u32 %v916, 4294901760
        %1728 = vmatmul.f32.gmra.mxu0 %v1727
        %v1729 = vpop.f32.mrf.mxu0
        %v1730 = vadd.f32 %v1645, %v1729
        %v1731 = vand.u32 %v918, 4294901760
        %1732 = vmatmul.f32.gmra.mxu0 %v1731
        %v1733 = vpop.f32.mrf.mxu0
        %v1734 = vadd.f32 %v1651, %v1733
        %v1735 = vand.u32 %v920, 4294901760
        %1736 = vmatmul.f32.gmra.mxu0 %v1735
        %v1737 = vpop.f32.mrf.mxu0
        %v1738 = vadd.f32 %v1657, %v1737
        %1739 = vdwg.mxu0
        %v1740 = vand.u32 %v911, 4294901760
        %1741 = vmatpush.msra.mxu0 %v1740
        %v1742 = vand.u32 %v909, 4294901760
        %1743 = vmatpush.msra.mxu0 %v1742
        %v1744 = vand.u32 %v907, 4294901760
        %1745 = vmatpush.msra.mxu0 %v1744
        %v1746 = vand.u32 %v905, 4294901760
        %1747 = vmatpush.msra.mxu0 %v1746
        %v1748 = vand.u32 %v903, 4294901760
        %1749 = vmatpush.msra.mxu0 %v1748
        %v1750 = vand.u32 %v901, 4294901760
        %1751 = vmatpush.msra.mxu0 %v1750
        %v1752 = vand.u32 %v899, 4294901760
        %1753 = vmatpush.msra.mxu0 %v1752
        %v1754 = vand.u32 %v897, 4294901760
        %1755 = vmatpush.msra.mxu0 %v1754
        %v1756 = vand.u32 %v895, 4294901760
        %1757 = vmatpush.msra.mxu0 %v1756
        %v1758 = vand.u32 %v893, 4294901760
        %1759 = vmatpush.msra.mxu0 %v1758
        %v1760 = vand.u32 %v891, 4294901760
        %1761 = vmatpush.msra.mxu0 %v1760
        %v1762 = vand.u32 %v889, 4294901760
        %1763 = vmatpush.msra.mxu0 %v1762
        %v1764 = vand.u32 %v887, 4294901760
        %1765 = vmatpush.msra.mxu0 %v1764
        %v1766 = vand.u32 %v885, 4294901760
        %1767 = vmatpush.msra.mxu0 %v1766
        %v1768 = vand.u32 %v883, 4294901760
        %1769 = vmatpush.msra.mxu0 %v1768
        %v1770 = vand.u32 %v881, 4294901760
        %1771 = vmatpush.msra.mxu0 %v1770
        %v1772 = vand.u32 %v914, 4294901760
        %1773 = vmatmul.f32.gmra.mxu0 %v1772
        %v1774 = vpop.f32.mrf.mxu0
        %v1775 = vadd.f32 %v1726, %v1774
        %v1776 = vand.u32 %v916, 4294901760
        %1777 = vmatmul.f32.gmra.mxu0 %v1776
        %v1778 = vpop.f32.mrf.mxu0
        %v1779 = vadd.f32 %v1730, %v1778
        %v1780 = vand.u32 %v918, 4294901760
        %1781 = vmatmul.f32.gmra.mxu0 %v1780
        %v1782 = vpop.f32.mrf.mxu0
        %v1783 = vadd.f32 %v1734, %v1782
        %v1784 = vand.u32 %v920, 4294901760
        %1785 = vmatmul.f32.gmra.mxu0 %v1784
        %v1786 = vpop.f32.mrf.mxu0
        %v1787 = vadd.f32 %v1738, %v1786
        %1788 = vdwg.mxu0
        %v1789 = vand.u32 %v880, 4294901760
        %1790 = vmatpush.msra.mxu0 %v1789
        %v1791 = vand.u32 %v878, 4294901760
        %1792 = vmatpush.msra.mxu0 %v1791
        %v1793 = vand.u32 %v876, 4294901760
        %1794 = vmatpush.msra.mxu0 %v1793
        %v1795 = vand.u32 %v874, 4294901760
        %1796 = vmatpush.msra.mxu0 %v1795
        %v1797 = vand.u32 %v872, 4294901760
        %1798 = vmatpush.msra.mxu0 %v1797
        %v1799 = vand.u32 %v870, 4294901760
        %1800 = vmatpush.msra.mxu0 %v1799
        %v1801 = vand.u32 %v868, 4294901760
        %1802 = vmatpush.msra.mxu0 %v1801
        %v1803 = vand.u32 %v866, 4294901760
        %1804 = vmatpush.msra.mxu0 %v1803
        %v1805 = vand.u32 %v864, 4294901760
        %1806 = vmatpush.msra.mxu0 %v1805
        %v1807 = vand.u32 %v862, 4294901760
        %1808 = vmatpush.msra.mxu0 %v1807
        %v1809 = vand.u32 %v860, 4294901760
        %1810 = vmatpush.msra.mxu0 %v1809
        %v1811 = vand.u32 %v858, 4294901760
        %1812 = vmatpush.msra.mxu0 %v1811
        %v1813 = vand.u32 %v856, 4294901760
        %1814 = vmatpush.msra.mxu0 %v1813
        %v1815 = vand.u32 %v854, 4294901760
        %1816 = vmatpush.msra.mxu0 %v1815
        %v1817 = vand.u32 %v852, 4294901760
        %1818 = vmatpush.msra.mxu0 %v1817
        %v1819 = vand.u32 %v850, 4294901760
        %1820 = vmatpush.msra.mxu0 %v1819
        %v1821 = vand.u32 %v913, 4294901760
        %v1822 = vsub.f32 %v913, %v1821
        %v1823 = vand.u32 %v1822, 4294901760
        %v1824 = vsub.f32 %v1822, %v1823
        %v1825 = vand.u32 %v1824, 4294901760
        %1826 = vmatmul.f32.gmra.mxu0 %v1825
        %v1827 = vpop.f32.mrf.mxu0
        %v1828 = vadd.f32 0.0, %v1827
        %v1829 = vand.u32 %v915, 4294901760
        %v1830 = vsub.f32 %v915, %v1829
        %v1831 = vand.u32 %v1830, 4294901760
        %v1832 = vsub.f32 %v1830, %v1831
        %v1833 = vand.u32 %v1832, 4294901760
        %1834 = vmatmul.f32.gmra.mxu0 %v1833
        %v1835 = vpop.f32.mrf.mxu0
        %v1836 = vadd.f32 0.0, %v1835
        %v1837 = vand.u32 %v917, 4294901760
        %v1838 = vsub.f32 %v917, %v1837
        %v1839 = vand.u32 %v1838, 4294901760
        %v1840 = vsub.f32 %v1838, %v1839
        %v1841 = vand.u32 %v1840, 4294901760
        %1842 = vmatmul.f32.gmra.mxu0 %v1841
        %v1843 = vpop.f32.mrf.mxu0
        %v1844 = vadd.f32 0.0, %v1843
        %v1845 = vand.u32 %v919, 4294901760
        %v1846 = vsub.f32 %v919, %v1845
        %v1847 = vand.u32 %v1846, 4294901760
        %v1848 = vsub.f32 %v1846, %v1847
        %v1849 = vand.u32 %v1848, 4294901760
        %1850 = vmatmul.f32.gmra.mxu0 %v1849
        %v1851 = vpop.f32.mrf.mxu0
        %v1852 = vadd.f32 0.0, %v1851
        %1853 = vdwg.mxu0
        %v1854 = vand.u32 %v880, 4294901760
        %v1855 = vsub.f32 %v880, %v1854
        %v1856 = vand.u32 %v1855, 4294901760
        %v1857 = vsub.f32 %v1855, %v1856
        %v1858 = vand.u32 %v1857, 4294901760
        %1859 = vmatpush.msra.mxu0 %v1858
        %v1860 = vand.u32 %v878, 4294901760
        %v1861 = vsub.f32 %v878, %v1860
        %v1862 = vand.u32 %v1861, 4294901760
        %v1863 = vsub.f32 %v1861, %v1862
        %v1864 = vand.u32 %v1863, 4294901760
        %1865 = vmatpush.msra.mxu0 %v1864
        %v1866 = vand.u32 %v876, 4294901760
        %v1867 = vsub.f32 %v876, %v1866
        %v1868 = vand.u32 %v1867, 4294901760
        %v1869 = vsub.f32 %v1867, %v1868
        %v1870 = vand.u32 %v1869, 4294901760
        %1871 = vmatpush.msra.mxu0 %v1870
        %v1872 = vand.u32 %v874, 4294901760
        %v1873 = vsub.f32 %v874, %v1872
        %v1874 = vand.u32 %v1873, 4294901760
        %v1875 = vsub.f32 %v1873, %v1874
        %v1876 = vand.u32 %v1875, 4294901760
        %1877 = vmatpush.msra.mxu0 %v1876
        %v1878 = vand.u32 %v872, 4294901760
        %v1879 = vsub.f32 %v872, %v1878
        %v1880 = vand.u32 %v1879, 4294901760
        %v1881 = vsub.f32 %v1879, %v1880
        %v1882 = vand.u32 %v1881, 4294901760
        %1883 = vmatpush.msra.mxu0 %v1882
        %v1884 = vand.u32 %v870, 4294901760
        %v1885 = vsub.f32 %v870, %v1884
        %v1886 = vand.u32 %v1885, 4294901760
        %v1887 = vsub.f32 %v1885, %v1886
        %v1888 = vand.u32 %v1887, 4294901760
        %1889 = vmatpush.msra.mxu0 %v1888
        %v1890 = vand.u32 %v868, 4294901760
        %v1891 = vsub.f32 %v868, %v1890
        %v1892 = vand.u32 %v1891, 4294901760
        %v1893 = vsub.f32 %v1891, %v1892
        %v1894 = vand.u32 %v1893, 4294901760
        %1895 = vmatpush.msra.mxu0 %v1894
        %v1896 = vand.u32 %v866, 4294901760
        %v1897 = vsub.f32 %v866, %v1896
        %v1898 = vand.u32 %v1897, 4294901760
        %v1899 = vsub.f32 %v1897, %v1898
        %v1900 = vand.u32 %v1899, 4294901760
        %1901 = vmatpush.msra.mxu0 %v1900
        %v1902 = vand.u32 %v864, 4294901760
        %v1903 = vsub.f32 %v864, %v1902
        %v1904 = vand.u32 %v1903, 4294901760
        %v1905 = vsub.f32 %v1903, %v1904
        %v1906 = vand.u32 %v1905, 4294901760
        %1907 = vmatpush.msra.mxu0 %v1906
        %v1908 = vand.u32 %v862, 4294901760
        %v1909 = vsub.f32 %v862, %v1908
        %v1910 = vand.u32 %v1909, 4294901760
        %v1911 = vsub.f32 %v1909, %v1910
        %v1912 = vand.u32 %v1911, 4294901760
        %1913 = vmatpush.msra.mxu0 %v1912
        %v1914 = vand.u32 %v860, 4294901760
        %v1915 = vsub.f32 %v860, %v1914
        %v1916 = vand.u32 %v1915, 4294901760
        %v1917 = vsub.f32 %v1915, %v1916
        %v1918 = vand.u32 %v1917, 4294901760
        %1919 = vmatpush.msra.mxu0 %v1918
        %v1920 = vand.u32 %v858, 4294901760
        %v1921 = vsub.f32 %v858, %v1920
        %v1922 = vand.u32 %v1921, 4294901760
        %v1923 = vsub.f32 %v1921, %v1922
        %v1924 = vand.u32 %v1923, 4294901760
        %1925 = vmatpush.msra.mxu0 %v1924
        %v1926 = vand.u32 %v856, 4294901760
        %v1927 = vsub.f32 %v856, %v1926
        %v1928 = vand.u32 %v1927, 4294901760
        %v1929 = vsub.f32 %v1927, %v1928
        %v1930 = vand.u32 %v1929, 4294901760
        %1931 = vmatpush.msra.mxu0 %v1930
        %v1932 = vand.u32 %v854, 4294901760
        %v1933 = vsub.f32 %v854, %v1932
        %v1934 = vand.u32 %v1933, 4294901760
        %v1935 = vsub.f32 %v1933, %v1934
        %v1936 = vand.u32 %v1935, 4294901760
        %1937 = vmatpush.msra.mxu0 %v1936
        %v1938 = vand.u32 %v852, 4294901760
        %v1939 = vsub.f32 %v852, %v1938
        %v1940 = vand.u32 %v1939, 4294901760
        %v1941 = vsub.f32 %v1939, %v1940
        %v1942 = vand.u32 %v1941, 4294901760
        %1943 = vmatpush.msra.mxu0 %v1942
        %v1944 = vand.u32 %v850, 4294901760
        %v1945 = vsub.f32 %v850, %v1944
        %v1946 = vand.u32 %v1945, 4294901760
        %v1947 = vsub.f32 %v1945, %v1946
        %v1948 = vand.u32 %v1947, 4294901760
        %1949 = vmatpush.msra.mxu0 %v1948
        %v1950 = vand.u32 %v913, 4294901760
        %1951 = vmatmul.f32.gmra.mxu0 %v1950
        %v1952 = vpop.f32.mrf.mxu0
        %v1953 = vadd.f32 %v1828, %v1952
        %v1954 = vand.u32 %v915, 4294901760
        %1955 = vmatmul.f32.gmra.mxu0 %v1954
        %v1956 = vpop.f32.mrf.mxu0
        %v1957 = vadd.f32 %v1836, %v1956
        %v1958 = vand.u32 %v917, 4294901760
        %1959 = vmatmul.f32.gmra.mxu0 %v1958
        %v1960 = vpop.f32.mrf.mxu0
        %v1961 = vadd.f32 %v1844, %v1960
        %v1962 = vand.u32 %v919, 4294901760
        %1963 = vmatmul.f32.gmra.mxu0 %v1962
        %v1964 = vpop.f32.mrf.mxu0
        %v1965 = vadd.f32 %v1852, %v1964
        %1966 = vdwg.mxu0
        %v1967 = vand.u32 %v880, 4294901760
        %v1968 = vsub.f32 %v880, %v1967
        %1969 = vmatpush.msra.mxu0 %v1968
        %v1970 = vand.u32 %v878, 4294901760
        %v1971 = vsub.f32 %v878, %v1970
        %1972 = vmatpush.msra.mxu0 %v1971
        %v1973 = vand.u32 %v876, 4294901760
        %v1974 = vsub.f32 %v876, %v1973
        %1975 = vmatpush.msra.mxu0 %v1974
        %v1976 = vand.u32 %v874, 4294901760
        %v1977 = vsub.f32 %v874, %v1976
        %1978 = vmatpush.msra.mxu0 %v1977
        %v1979 = vand.u32 %v872, 4294901760
        %v1980 = vsub.f32 %v872, %v1979
        %1981 = vmatpush.msra.mxu0 %v1980
        %v1982 = vand.u32 %v870, 4294901760
        %v1983 = vsub.f32 %v870, %v1982
        %1984 = vmatpush.msra.mxu0 %v1983
        %v1985 = vand.u32 %v868, 4294901760
        %v1986 = vsub.f32 %v868, %v1985
        %1987 = vmatpush.msra.mxu0 %v1986
        %v1988 = vand.u32 %v866, 4294901760
        %v1989 = vsub.f32 %v866, %v1988
        %1990 = vmatpush.msra.mxu0 %v1989
        %v1991 = vand.u32 %v864, 4294901760
        %v1992 = vsub.f32 %v864, %v1991
        %1993 = vmatpush.msra.mxu0 %v1992
        %v1994 = vand.u32 %v862, 4294901760
        %v1995 = vsub.f32 %v862, %v1994
        %1996 = vmatpush.msra.mxu0 %v1995
        %v1997 = vand.u32 %v860, 4294901760
        %v1998 = vsub.f32 %v860, %v1997
        %1999 = vmatpush.msra.mxu0 %v1998
        %v2000 = vand.u32 %v858, 4294901760
        %v2001 = vsub.f32 %v858, %v2000
        %2002 = vmatpush.msra.mxu0 %v2001
        %v2003 = vand.u32 %v856, 4294901760
        %v2004 = vsub.f32 %v856, %v2003
        %2005 = vmatpush.msra.mxu0 %v2004
        %v2006 = vand.u32 %v854, 4294901760
        %v2007 = vsub.f32 %v854, %v2006
        %2008 = vmatpush.msra.mxu0 %v2007
        %v2009 = vand.u32 %v852, 4294901760
        %v2010 = vsub.f32 %v852, %v2009
        %2011 = vmatpush.msra.mxu0 %v2010
        %v2012 = vand.u32 %v850, 4294901760
        %v2013 = vsub.f32 %v850, %v2012
        %2014 = vmatpush.msra.mxu0 %v2013
        %v2015 = vand.u32 %v913, 4294901760
        %v2016 = vsub.f32 %v913, %v2015
        %2017 = vmatmul.f32.gmra.mxu0 %v2016
        %v2018 = vpop.f32.mrf.mxu0
        %v2019 = vadd.f32 %v1953, %v2018
        %v2020 = vand.u32 %v915, 4294901760
        %v2021 = vsub.f32 %v915, %v2020
        %2022 = vmatmul.f32.gmra.mxu0 %v2021
        %v2023 = vpop.f32.mrf.mxu0
        %v2024 = vadd.f32 %v1957, %v2023
        %v2025 = vand.u32 %v917, 4294901760
        %v2026 = vsub.f32 %v917, %v2025
        %2027 = vmatmul.f32.gmra.mxu0 %v2026
        %v2028 = vpop.f32.mrf.mxu0
        %v2029 = vadd.f32 %v1961, %v2028
        %v2030 = vand.u32 %v919, 4294901760
        %v2031 = vsub.f32 %v919, %v2030
        %2032 = vmatmul.f32.gmra.mxu0 %v2031
        %v2033 = vpop.f32.mrf.mxu0
        %v2034 = vadd.f32 %v1965, %v2033
        %2035 = vdwg.mxu0
        %v2036 = vand.u32 %v880, 4294901760
        %2037 = vmatpush.msra.mxu0 %v2036
        %v2038 = vand.u32 %v878, 4294901760
        %2039 = vmatpush.msra.mxu0 %v2038
        %v2040 = vand.u32 %v876, 4294901760
        %2041 = vmatpush.msra.mxu0 %v2040
        %v2042 = vand.u32 %v874, 4294901760
        %2043 = vmatpush.msra.mxu0 %v2042
        %v2044 = vand.u32 %v872, 4294901760
        %2045 = vmatpush.msra.mxu0 %v2044
        %v2046 = vand.u32 %v870, 4294901760
        %2047 = vmatpush.msra.mxu0 %v2046
        %v2048 = vand.u32 %v868, 4294901760
        %2049 = vmatpush.msra.mxu0 %v2048
        %v2050 = vand.u32 %v866, 4294901760
        %2051 = vmatpush.msra.mxu0 %v2050
        %v2052 = vand.u32 %v864, 4294901760
        %2053 = vmatpush.msra.mxu0 %v2052
        %v2054 = vand.u32 %v862, 4294901760
        %2055 = vmatpush.msra.mxu0 %v2054
        %v2056 = vand.u32 %v860, 4294901760
        %2057 = vmatpush.msra.mxu0 %v2056
        %v2058 = vand.u32 %v858, 4294901760
        %2059 = vmatpush.msra.mxu0 %v2058
        %v2060 = vand.u32 %v856, 4294901760
        %2061 = vmatpush.msra.mxu0 %v2060
        %v2062 = vand.u32 %v854, 4294901760
        %2063 = vmatpush.msra.mxu0 %v2062
        %v2064 = vand.u32 %v852, 4294901760
        %2065 = vmatpush.msra.mxu0 %v2064
        %v2066 = vand.u32 %v850, 4294901760
        %2067 = vmatpush.msra.mxu0 %v2066
        %v2068 = vand.u32 %v913, 4294901760
        %v2069 = vsub.f32 %v913, %v2068
        %v2070 = vand.u32 %v2069, 4294901760
        %2071 = vmatmul.f32.gmra.mxu0 %v2070
        %v2072 = vpop.f32.mrf.mxu0
        %v2073 = vadd.f32 %v2019, %v2072
        %v2074 = vand.u32 %v915, 4294901760
        %v2075 = vsub.f32 %v915, %v2074
        %v2076 = vand.u32 %v2075, 4294901760
        %2077 = vmatmul.f32.gmra.mxu0 %v2076
        %v2078 = vpop.f32.mrf.mxu0
        %v2079 = vadd.f32 %v2024, %v2078
        %v2080 = vand.u32 %v917, 4294901760
        %v2081 = vsub.f32 %v917, %v2080
        %v2082 = vand.u32 %v2081, 4294901760
        %2083 = vmatmul.f32.gmra.mxu0 %v2082
        %v2084 = vpop.f32.mrf.mxu0
        %v2085 = vadd.f32 %v2029, %v2084
        %v2086 = vand.u32 %v919, 4294901760
        %v2087 = vsub.f32 %v919, %v2086
        %v2088 = vand.u32 %v2087, 4294901760
        %2089 = vmatmul.f32.gmra.mxu0 %v2088
        %v2090 = vpop.f32.mrf.mxu0
        %v2091 = vadd.f32 %v2034, %v2090
        %2092 = vdwg.mxu0
        %v2093 = vand.u32 %v880, 4294901760
        %v2094 = vsub.f32 %v880, %v2093
        %v2095 = vand.u32 %v2094, 4294901760
        %2096 = vmatpush.msra.mxu0 %v2095
        %v2097 = vand.u32 %v878, 4294901760
        %v2098 = vsub.f32 %v878, %v2097
        %v2099 = vand.u32 %v2098, 4294901760
        %2100 = vmatpush.msra.mxu0 %v2099
        %v2101 = vand.u32 %v876, 4294901760
        %v2102 = vsub.f32 %v876, %v2101
        %v2103 = vand.u32 %v2102, 4294901760
        %2104 = vmatpush.msra.mxu0 %v2103
        %v2105 = vand.u32 %v874, 4294901760
        %v2106 = vsub.f32 %v874, %v2105
        %v2107 = vand.u32 %v2106, 4294901760
        %2108 = vmatpush.msra.mxu0 %v2107
        %v2109 = vand.u32 %v872, 4294901760
        %v2110 = vsub.f32 %v872, %v2109
        %v2111 = vand.u32 %v2110, 4294901760
        %2112 = vmatpush.msra.mxu0 %v2111
        %v2113 = vand.u32 %v870, 4294901760
        %v2114 = vsub.f32 %v870, %v2113
        %v2115 = vand.u32 %v2114, 4294901760
        %2116 = vmatpush.msra.mxu0 %v2115
        %v2117 = vand.u32 %v868, 4294901760
        %v2118 = vsub.f32 %v868, %v2117
        %v2119 = vand.u32 %v2118, 4294901760
        %2120 = vmatpush.msra.mxu0 %v2119
        %v2121 = vand.u32 %v866, 4294901760
        %v2122 = vsub.f32 %v866, %v2121
        %v2123 = vand.u32 %v2122, 4294901760
        %2124 = vmatpush.msra.mxu0 %v2123
        %v2125 = vand.u32 %v864, 4294901760
        %v2126 = vsub.f32 %v864, %v2125
        %v2127 = vand.u32 %v2126, 4294901760
        %2128 = vmatpush.msra.mxu0 %v2127
        %v2129 = vand.u32 %v862, 4294901760
        %v2130 = vsub.f32 %v862, %v2129
        %v2131 = vand.u32 %v2130, 4294901760
        %2132 = vmatpush.msra.mxu0 %v2131
        %v2133 = vand.u32 %v860, 4294901760
        %v2134 = vsub.f32 %v860, %v2133
        %v2135 = vand.u32 %v2134, 4294901760
        %2136 = vmatpush.msra.mxu0 %v2135
        %v2137 = vand.u32 %v858, 4294901760
        %v2138 = vsub.f32 %v858, %v2137
        %v2139 = vand.u32 %v2138, 4294901760
        %2140 = vmatpush.msra.mxu0 %v2139
        %v2141 = vand.u32 %v856, 4294901760
        %v2142 = vsub.f32 %v856, %v2141
        %v2143 = vand.u32 %v2142, 4294901760
        %2144 = vmatpush.msra.mxu0 %v2143
        %v2145 = vand.u32 %v854, 4294901760
        %v2146 = vsub.f32 %v854, %v2145
        %v2147 = vand.u32 %v2146, 4294901760
        %2148 = vmatpush.msra.mxu0 %v2147
        %v2149 = vand.u32 %v852, 4294901760
        %v2150 = vsub.f32 %v852, %v2149
        %v2151 = vand.u32 %v2150, 4294901760
        %2152 = vmatpush.msra.mxu0 %v2151
        %v2153 = vand.u32 %v850, 4294901760
        %v2154 = vsub.f32 %v850, %v2153
        %v2155 = vand.u32 %v2154, 4294901760
        %2156 = vmatpush.msra.mxu0 %v2155
        %v2157 = vand.u32 %v913, 4294901760
        %2158 = vmatmul.f32.gmra.mxu0 %v2157
        %v2159 = vpop.f32.mrf.mxu0
        %v2160 = vadd.f32 %v2073, %v2159
        %v2161 = vand.u32 %v915, 4294901760
        %2162 = vmatmul.f32.gmra.mxu0 %v2161
        %v2163 = vpop.f32.mrf.mxu0
        %v2164 = vadd.f32 %v2079, %v2163
        %v2165 = vand.u32 %v917, 4294901760
        %2166 = vmatmul.f32.gmra.mxu0 %v2165
        %v2167 = vpop.f32.mrf.mxu0
        %v2168 = vadd.f32 %v2085, %v2167
        %v2169 = vand.u32 %v919, 4294901760
        %2170 = vmatmul.f32.gmra.mxu0 %v2169
        %v2171 = vpop.f32.mrf.mxu0
        %v2172 = vadd.f32 %v2091, %v2171
        %2173 = vdwg.mxu0
        %v2174 = vand.u32 %v880, 4294901760
        %2175 = vmatpush.msra.mxu0 %v2174
        %v2176 = vand.u32 %v878, 4294901760
        %2177 = vmatpush.msra.mxu0 %v2176
        %v2178 = vand.u32 %v876, 4294901760
        %2179 = vmatpush.msra.mxu0 %v2178
        %v2180 = vand.u32 %v874, 4294901760
        %2181 = vmatpush.msra.mxu0 %v2180
        %v2182 = vand.u32 %v872, 4294901760
        %2183 = vmatpush.msra.mxu0 %v2182
        %v2184 = vand.u32 %v870, 4294901760
        %2185 = vmatpush.msra.mxu0 %v2184
        %v2186 = vand.u32 %v868, 4294901760
        %2187 = vmatpush.msra.mxu0 %v2186
        %v2188 = vand.u32 %v866, 4294901760
        %2189 = vmatpush.msra.mxu0 %v2188
        %v2190 = vand.u32 %v864, 4294901760
        %2191 = vmatpush.msra.mxu0 %v2190
        %v2192 = vand.u32 %v862, 4294901760
        %2193 = vmatpush.msra.mxu0 %v2192
        %v2194 = vand.u32 %v860, 4294901760
        %2195 = vmatpush.msra.mxu0 %v2194
        %v2196 = vand.u32 %v858, 4294901760
        %2197 = vmatpush.msra.mxu0 %v2196
        %v2198 = vand.u32 %v856, 4294901760
        %2199 = vmatpush.msra.mxu0 %v2198
        %v2200 = vand.u32 %v854, 4294901760
        %2201 = vmatpush.msra.mxu0 %v2200
        %v2202 = vand.u32 %v852, 4294901760
        %2203 = vmatpush.msra.mxu0 %v2202
        %v2204 = vand.u32 %v850, 4294901760
        %2205 = vmatpush.msra.mxu0 %v2204
        %v2206 = vand.u32 %v913, 4294901760
        %2207 = vmatmul.f32.gmra.mxu0 %v2206
        %v2208 = vpop.f32.mrf.mxu0
        %v2209 = vadd.f32 %v2160, %v2208
        %v2210 = vand.u32 %v915, 4294901760
        %2211 = vmatmul.f32.gmra.mxu0 %v2210
        %v2212 = vpop.f32.mrf.mxu0
        %v2213 = vadd.f32 %v2164, %v2212
        %v2214 = vand.u32 %v917, 4294901760
        %2215 = vmatmul.f32.gmra.mxu0 %v2214
        %v2216 = vpop.f32.mrf.mxu0
        %v2217 = vadd.f32 %v2168, %v2216
        %v2218 = vand.u32 %v919, 4294901760
        %2219 = vmatmul.f32.gmra.mxu0 %v2218
        %v2220 = vpop.f32.mrf.mxu0
        %v2221 = vadd.f32 %v2172, %v2220
        %2222 = vdwg.mxu0
        %v2223 = vand.u32 %v912, 4294901760
        %2224 = vmatpush.msra.mxu0 %v2223
        %v2225 = vand.u32 %v910, 4294901760
        %2226 = vmatpush.msra.mxu0 %v2225
        %v2227 = vand.u32 %v908, 4294901760
        %2228 = vmatpush.msra.mxu0 %v2227
        %v2229 = vand.u32 %v906, 4294901760
        %2230 = vmatpush.msra.mxu0 %v2229
        %v2231 = vand.u32 %v904, 4294901760
        %2232 = vmatpush.msra.mxu0 %v2231
        %v2233 = vand.u32 %v902, 4294901760
        %2234 = vmatpush.msra.mxu0 %v2233
        %v2235 = vand.u32 %v900, 4294901760
        %2236 = vmatpush.msra.mxu0 %v2235
        %v2237 = vand.u32 %v898, 4294901760
        %2238 = vmatpush.msra.mxu0 %v2237
        %v2239 = vand.u32 %v896, 4294901760
        %2240 = vmatpush.msra.mxu0 %v2239
        %v2241 = vand.u32 %v894, 4294901760
        %2242 = vmatpush.msra.mxu0 %v2241
        %v2243 = vand.u32 %v892, 4294901760
        %2244 = vmatpush.msra.mxu0 %v2243
        %v2245 = vand.u32 %v890, 4294901760
        %2246 = vmatpush.msra.mxu0 %v2245
        %v2247 = vand.u32 %v888, 4294901760
        %2248 = vmatpush.msra.mxu0 %v2247
        %v2249 = vand.u32 %v886, 4294901760
        %2250 = vmatpush.msra.mxu0 %v2249
        %v2251 = vand.u32 %v884, 4294901760
        %2252 = vmatpush.msra.mxu0 %v2251
        %v2253 = vand.u32 %v882, 4294901760
        %2254 = vmatpush.msra.mxu0 %v2253
        %v2255 = vand.u32 %v914, 4294901760
        %v2256 = vsub.f32 %v914, %v2255
        %v2257 = vand.u32 %v2256, 4294901760
        %v2258 = vsub.f32 %v2256, %v2257
        %v2259 = vand.u32 %v2258, 4294901760
        %2260 = vmatmul.f32.gmra.mxu0 %v2259
        %v2261 = vpop.f32.mrf.mxu0
        %v2262 = vadd.f32 %v2209, %v2261
        %v2263 = vand.u32 %v916, 4294901760
        %v2264 = vsub.f32 %v916, %v2263
        %v2265 = vand.u32 %v2264, 4294901760
        %v2266 = vsub.f32 %v2264, %v2265
        %v2267 = vand.u32 %v2266, 4294901760
        %2268 = vmatmul.f32.gmra.mxu0 %v2267
        %v2269 = vpop.f32.mrf.mxu0
        %v2270 = vadd.f32 %v2213, %v2269
        %v2271 = vand.u32 %v918, 4294901760
        %v2272 = vsub.f32 %v918, %v2271
        %v2273 = vand.u32 %v2272, 4294901760
        %v2274 = vsub.f32 %v2272, %v2273
        %v2275 = vand.u32 %v2274, 4294901760
        %2276 = vmatmul.f32.gmra.mxu0 %v2275
        %v2277 = vpop.f32.mrf.mxu0
        %v2278 = vadd.f32 %v2217, %v2277
        %v2279 = vand.u32 %v920, 4294901760
        %v2280 = vsub.f32 %v920, %v2279
        %v2281 = vand.u32 %v2280, 4294901760
        %v2282 = vsub.f32 %v2280, %v2281
        %v2283 = vand.u32 %v2282, 4294901760
        %2284 = vmatmul.f32.gmra.mxu0 %v2283
        %v2285 = vpop.f32.mrf.mxu0
        %v2286 = vadd.f32 %v2221, %v2285
        %2287 = vdwg.mxu0
        %v2288 = vand.u32 %v912, 4294901760
        %v2289 = vsub.f32 %v912, %v2288
        %v2290 = vand.u32 %v2289, 4294901760
        %v2291 = vsub.f32 %v2289, %v2290
        %v2292 = vand.u32 %v2291, 4294901760
        %2293 = vmatpush.msra.mxu0 %v2292
        %v2294 = vand.u32 %v910, 4294901760
        %v2295 = vsub.f32 %v910, %v2294
        %v2296 = vand.u32 %v2295, 4294901760
        %v2297 = vsub.f32 %v2295, %v2296
        %v2298 = vand.u32 %v2297, 4294901760
        %2299 = vmatpush.msra.mxu0 %v2298
        %v2300 = vand.u32 %v908, 4294901760
        %v2301 = vsub.f32 %v908, %v2300
        %v2302 = vand.u32 %v2301, 4294901760
        %v2303 = vsub.f32 %v2301, %v2302
        %v2304 = vand.u32 %v2303, 4294901760
        %2305 = vmatpush.msra.mxu0 %v2304
        %v2306 = vand.u32 %v906, 4294901760
        %v2307 = vsub.f32 %v906, %v2306
        %v2308 = vand.u32 %v2307, 4294901760
        %v2309 = vsub.f32 %v2307, %v2308
        %v2310 = vand.u32 %v2309, 4294901760
        %2311 = vmatpush.msra.mxu0 %v2310
        %v2312 = vand.u32 %v904, 4294901760
        %v2313 = vsub.f32 %v904, %v2312
        %v2314 = vand.u32 %v2313, 4294901760
        %v2315 = vsub.f32 %v2313, %v2314
        %v2316 = vand.u32 %v2315, 4294901760
        %2317 = vmatpush.msra.mxu0 %v2316
        %v2318 = vand.u32 %v902, 4294901760
        %v2319 = vsub.f32 %v902, %v2318
        %v2320 = vand.u32 %v2319, 4294901760
        %v2321 = vsub.f32 %v2319, %v2320
        %v2322 = vand.u32 %v2321, 4294901760
        %2323 = vmatpush.msra.mxu0 %v2322
        %v2324 = vand.u32 %v900, 4294901760
        %v2325 = vsub.f32 %v900, %v2324
        %v2326 = vand.u32 %v2325, 4294901760
        %v2327 = vsub.f32 %v2325, %v2326
        %v2328 = vand.u32 %v2327, 4294901760
        %2329 = vmatpush.msra.mxu0 %v2328
        %v2330 = vand.u32 %v898, 4294901760
        %v2331 = vsub.f32 %v898, %v2330
        %v2332 = vand.u32 %v2331, 4294901760
        %v2333 = vsub.f32 %v2331, %v2332
        %v2334 = vand.u32 %v2333, 4294901760
        %2335 = vmatpush.msra.mxu0 %v2334
        %v2336 = vand.u32 %v896, 4294901760
        %v2337 = vsub.f32 %v896, %v2336
        %v2338 = vand.u32 %v2337, 4294901760
        %v2339 = vsub.f32 %v2337, %v2338
        %v2340 = vand.u32 %v2339, 4294901760
        %2341 = vmatpush.msra.mxu0 %v2340
        %v2342 = vand.u32 %v894, 4294901760
        %v2343 = vsub.f32 %v894, %v2342
        %v2344 = vand.u32 %v2343, 4294901760
        %v2345 = vsub.f32 %v2343, %v2344
        %v2346 = vand.u32 %v2345, 4294901760
        %2347 = vmatpush.msra.mxu0 %v2346
        %v2348 = vand.u32 %v892, 4294901760
        %v2349 = vsub.f32 %v892, %v2348
        %v2350 = vand.u32 %v2349, 4294901760
        %v2351 = vsub.f32 %v2349, %v2350
        %v2352 = vand.u32 %v2351, 4294901760
        %2353 = vmatpush.msra.mxu0 %v2352
        %v2354 = vand.u32 %v890, 4294901760
        %v2355 = vsub.f32 %v890, %v2354
        %v2356 = vand.u32 %v2355, 4294901760
        %v2357 = vsub.f32 %v2355, %v2356
        %v2358 = vand.u32 %v2357, 4294901760
        %2359 = vmatpush.msra.mxu0 %v2358
        %v2360 = vand.u32 %v888, 4294901760
        %v2361 = vsub.f32 %v888, %v2360
        %v2362 = vand.u32 %v2361, 4294901760
        %v2363 = vsub.f32 %v2361, %v2362
        %v2364 = vand.u32 %v2363, 4294901760
        %2365 = vmatpush.msra.mxu0 %v2364
        %v2366 = vand.u32 %v886, 4294901760
        %v2367 = vsub.f32 %v886, %v2366
        %v2368 = vand.u32 %v2367, 4294901760
        %v2369 = vsub.f32 %v2367, %v2368
        %v2370 = vand.u32 %v2369, 4294901760
        %2371 = vmatpush.msra.mxu0 %v2370
        %v2372 = vand.u32 %v884, 4294901760
        %v2373 = vsub.f32 %v884, %v2372
        %v2374 = vand.u32 %v2373, 4294901760
        %v2375 = vsub.f32 %v2373, %v2374
        %v2376 = vand.u32 %v2375, 4294901760
        %2377 = vmatpush.msra.mxu0 %v2376
        %v2378 = vand.u32 %v882, 4294901760
        %v2379 = vsub.f32 %v882, %v2378
        %v2380 = vand.u32 %v2379, 4294901760
        %v2381 = vsub.f32 %v2379, %v2380
        %v2382 = vand.u32 %v2381, 4294901760
        %2383 = vmatpush.msra.mxu0 %v2382
        %v2384 = vand.u32 %v914, 4294901760
        %2385 = vmatmul.f32.gmra.mxu0 %v2384
        %v2386 = vpop.f32.mrf.mxu0
        %v2387 = vadd.f32 %v2262, %v2386
        %v2388 = vand.u32 %v916, 4294901760
        %2389 = vmatmul.f32.gmra.mxu0 %v2388
        %v2390 = vpop.f32.mrf.mxu0
        %v2391 = vadd.f32 %v2270, %v2390
        %v2392 = vand.u32 %v918, 4294901760
        %2393 = vmatmul.f32.gmra.mxu0 %v2392
        %v2394 = vpop.f32.mrf.mxu0
        %v2395 = vadd.f32 %v2278, %v2394
        %v2396 = vand.u32 %v920, 4294901760
        %2397 = vmatmul.f32.gmra.mxu0 %v2396
        %v2398 = vpop.f32.mrf.mxu0
        %v2399 = vadd.f32 %v2286, %v2398
        %2400 = vdwg.mxu0
        %v2401 = vand.u32 %v912, 4294901760
        %v2402 = vsub.f32 %v912, %v2401
        %2403 = vmatpush.msra.mxu0 %v2402
        %v2404 = vand.u32 %v910, 4294901760
        %v2405 = vsub.f32 %v910, %v2404
        %2406 = vmatpush.msra.mxu0 %v2405
        %v2407 = vand.u32 %v908, 4294901760
        %v2408 = vsub.f32 %v908, %v2407
        %2409 = vmatpush.msra.mxu0 %v2408
        %v2410 = vand.u32 %v906, 4294901760
        %v2411 = vsub.f32 %v906, %v2410
        %2412 = vmatpush.msra.mxu0 %v2411
        %v2413 = vand.u32 %v904, 4294901760
        %v2414 = vsub.f32 %v904, %v2413
        %2415 = vmatpush.msra.mxu0 %v2414
        %v2416 = vand.u32 %v902, 4294901760
        %v2417 = vsub.f32 %v902, %v2416
        %2418 = vmatpush.msra.mxu0 %v2417
        %v2419 = vand.u32 %v900, 4294901760
        %v2420 = vsub.f32 %v900, %v2419
        %2421 = vmatpush.msra.mxu0 %v2420
        %v2422 = vand.u32 %v898, 4294901760
        %v2423 = vsub.f32 %v898, %v2422
        %2424 = vmatpush.msra.mxu0 %v2423
        %v2425 = vand.u32 %v896, 4294901760
        %v2426 = vsub.f32 %v896, %v2425
        %2427 = vmatpush.msra.mxu0 %v2426
        %v2428 = vand.u32 %v894, 4294901760
        %v2429 = vsub.f32 %v894, %v2428
        %2430 = vmatpush.msra.mxu0 %v2429
        %v2431 = vand.u32 %v892, 4294901760
        %v2432 = vsub.f32 %v892, %v2431
        %2433 = vmatpush.msra.mxu0 %v2432
        %v2434 = vand.u32 %v890, 4294901760
        %v2435 = vsub.f32 %v890, %v2434
        %2436 = vmatpush.msra.mxu0 %v2435
        %v2437 = vand.u32 %v888, 4294901760
        %v2438 = vsub.f32 %v888, %v2437
        %2439 = vmatpush.msra.mxu0 %v2438
        %v2440 = vand.u32 %v886, 4294901760
        %v2441 = vsub.f32 %v886, %v2440
        %2442 = vmatpush.msra.mxu0 %v2441
        %v2443 = vand.u32 %v884, 4294901760
        %v2444 = vsub.f32 %v884, %v2443
        %2445 = vmatpush.msra.mxu0 %v2444
        %v2446 = vand.u32 %v882, 4294901760
        %v2447 = vsub.f32 %v882, %v2446
        %2448 = vmatpush.msra.mxu0 %v2447
        %v2449 = vand.u32 %v914, 4294901760
        %v2450 = vsub.f32 %v914, %v2449
        %2451 = vmatmul.f32.gmra.mxu0 %v2450
        %v2452 = vpop.f32.mrf.mxu0
        %v2453 = vadd.f32 %v2387, %v2452
        %v2454 = vand.u32 %v916, 4294901760
        %v2455 = vsub.f32 %v916, %v2454
        %2456 = vmatmul.f32.gmra.mxu0 %v2455
        %v2457 = vpop.f32.mrf.mxu0
        %v2458 = vadd.f32 %v2391, %v2457
        %v2459 = vand.u32 %v918, 4294901760
        %v2460 = vsub.f32 %v918, %v2459
        %2461 = vmatmul.f32.gmra.mxu0 %v2460
        %v2462 = vpop.f32.mrf.mxu0
        %v2463 = vadd.f32 %v2395, %v2462
        %v2464 = vand.u32 %v920, 4294901760
        %v2465 = vsub.f32 %v920, %v2464
        %2466 = vmatmul.f32.gmra.mxu0 %v2465
        %v2467 = vpop.f32.mrf.mxu0
        %v2468 = vadd.f32 %v2399, %v2467
        %2469 = vdwg.mxu0
        %v2470 = vand.u32 %v912, 4294901760
        %2471 = vmatpush.msra.mxu0 %v2470
        %v2472 = vand.u32 %v910, 4294901760
        %2473 = vmatpush.msra.mxu0 %v2472
        %v2474 = vand.u32 %v908, 4294901760
        %2475 = vmatpush.msra.mxu0 %v2474
        %v2476 = vand.u32 %v906, 4294901760
        %2477 = vmatpush.msra.mxu0 %v2476
        %v2478 = vand.u32 %v904, 4294901760
        %2479 = vmatpush.msra.mxu0 %v2478
        %v2480 = vand.u32 %v902, 4294901760
        %2481 = vmatpush.msra.mxu0 %v2480
        %v2482 = vand.u32 %v900, 4294901760
        %2483 = vmatpush.msra.mxu0 %v2482
        %v2484 = vand.u32 %v898, 4294901760
        %2485 = vmatpush.msra.mxu0 %v2484
        %v2486 = vand.u32 %v896, 4294901760
        %2487 = vmatpush.msra.mxu0 %v2486
        %v2488 = vand.u32 %v894, 4294901760
        %2489 = vmatpush.msra.mxu0 %v2488
        %v2490 = vand.u32 %v892, 4294901760
        %2491 = vmatpush.msra.mxu0 %v2490
        %v2492 = vand.u32 %v890, 4294901760
        %2493 = vmatpush.msra.mxu0 %v2492
        %v2494 = vand.u32 %v888, 4294901760
        %2495 = vmatpush.msra.mxu0 %v2494
        %v2496 = vand.u32 %v886, 4294901760
        %2497 = vmatpush.msra.mxu0 %v2496
        %v2498 = vand.u32 %v884, 4294901760
        %2499 = vmatpush.msra.mxu0 %v2498
        %v2500 = vand.u32 %v882, 4294901760
        %2501 = vmatpush.msra.mxu0 %v2500
        %v2502 = vand.u32 %v914, 4294901760
        %v2503 = vsub.f32 %v914, %v2502
        %v2504 = vand.u32 %v2503, 4294901760
        %2505 = vmatmul.f32.gmra.mxu0 %v2504
        %v2506 = vpop.f32.mrf.mxu0
        %v2507 = vadd.f32 %v2453, %v2506
        %v2508 = vand.u32 %v916, 4294901760
        %v2509 = vsub.f32 %v916, %v2508
        %v2510 = vand.u32 %v2509, 4294901760
        %2511 = vmatmul.f32.gmra.mxu0 %v2510
        %v2512 = vpop.f32.mrf.mxu0
        %v2513 = vadd.f32 %v2458, %v2512
        %v2514 = vand.u32 %v918, 4294901760
        %v2515 = vsub.f32 %v918, %v2514
        %v2516 = vand.u32 %v2515, 4294901760
        %2517 = vmatmul.f32.gmra.mxu0 %v2516
        %v2518 = vpop.f32.mrf.mxu0
        %v2519 = vadd.f32 %v2463, %v2518
        %v2520 = vand.u32 %v920, 4294901760
        %v2521 = vsub.f32 %v920, %v2520
        %v2522 = vand.u32 %v2521, 4294901760
        %2523 = vmatmul.f32.gmra.mxu0 %v2522
        %v2524 = vpop.f32.mrf.mxu0
        %v2525 = vadd.f32 %v2468, %v2524
        %2526 = vdwg.mxu0
        %v2527 = vand.u32 %v912, 4294901760
        %v2528 = vsub.f32 %v912, %v2527
        %v2529 = vand.u32 %v2528, 4294901760
        %2530 = vmatpush.msra.mxu0 %v2529
        %v2531 = vand.u32 %v910, 4294901760
        %v2532 = vsub.f32 %v910, %v2531
        %v2533 = vand.u32 %v2532, 4294901760
        %2534 = vmatpush.msra.mxu0 %v2533
        %v2535 = vand.u32 %v908, 4294901760
        %v2536 = vsub.f32 %v908, %v2535
        %v2537 = vand.u32 %v2536, 4294901760
        %2538 = vmatpush.msra.mxu0 %v2537
        %v2539 = vand.u32 %v906, 4294901760
        %v2540 = vsub.f32 %v906, %v2539
        %v2541 = vand.u32 %v2540, 4294901760
        %2542 = vmatpush.msra.mxu0 %v2541
        %v2543 = vand.u32 %v904, 4294901760
        %v2544 = vsub.f32 %v904, %v2543
        %v2545 = vand.u32 %v2544, 4294901760
        %2546 = vmatpush.msra.mxu0 %v2545
        %v2547 = vand.u32 %v902, 4294901760
        %v2548 = vsub.f32 %v902, %v2547
        %v2549 = vand.u32 %v2548, 4294901760
        %2550 = vmatpush.msra.mxu0 %v2549
        %v2551 = vand.u32 %v900, 4294901760
        %v2552 = vsub.f32 %v900, %v2551
        %v2553 = vand.u32 %v2552, 4294901760
        %2554 = vmatpush.msra.mxu0 %v2553
        %v2555 = vand.u32 %v898, 4294901760
        %v2556 = vsub.f32 %v898, %v2555
        %v2557 = vand.u32 %v2556, 4294901760
        %2558 = vmatpush.msra.mxu0 %v2557
        %v2559 = vand.u32 %v896, 4294901760
        %v2560 = vsub.f32 %v896, %v2559
        %v2561 = vand.u32 %v2560, 4294901760
        %2562 = vmatpush.msra.mxu0 %v2561
        %v2563 = vand.u32 %v894, 4294901760
        %v2564 = vsub.f32 %v894, %v2563
        %v2565 = vand.u32 %v2564, 4294901760
        %2566 = vmatpush.msra.mxu0 %v2565
        %v2567 = vand.u32 %v892, 4294901760
        %v2568 = vsub.f32 %v892, %v2567
        %v2569 = vand.u32 %v2568, 4294901760
        %2570 = vmatpush.msra.mxu0 %v2569
        %v2571 = vand.u32 %v890, 4294901760
        %v2572 = vsub.f32 %v890, %v2571
        %v2573 = vand.u32 %v2572, 4294901760
        %2574 = vmatpush.msra.mxu0 %v2573
        %v2575 = vand.u32 %v888, 4294901760
        %v2576 = vsub.f32 %v888, %v2575
        %v2577 = vand.u32 %v2576, 4294901760
        %2578 = vmatpush.msra.mxu0 %v2577
        %v2579 = vand.u32 %v886, 4294901760
        %v2580 = vsub.f32 %v886, %v2579
        %v2581 = vand.u32 %v2580, 4294901760
        %2582 = vmatpush.msra.mxu0 %v2581
        %v2583 = vand.u32 %v884, 4294901760
        %v2584 = vsub.f32 %v884, %v2583
        %v2585 = vand.u32 %v2584, 4294901760
        %2586 = vmatpush.msra.mxu0 %v2585
        %v2587 = vand.u32 %v882, 4294901760
        %v2588 = vsub.f32 %v882, %v2587
        %v2589 = vand.u32 %v2588, 4294901760
        %2590 = vmatpush.msra.mxu0 %v2589
        %v2591 = vand.u32 %v914, 4294901760
        %2592 = vmatmul.f32.gmra.mxu0 %v2591
        %v2593 = vpop.f32.mrf.mxu0
        %v2594 = vadd.f32 %v2507, %v2593
        %v2595 = vand.u32 %v916, 4294901760
        %2596 = vmatmul.f32.gmra.mxu0 %v2595
        %v2597 = vpop.f32.mrf.mxu0
        %v2598 = vadd.f32 %v2513, %v2597
        %v2599 = vand.u32 %v918, 4294901760
        %2600 = vmatmul.f32.gmra.mxu0 %v2599
        %v2601 = vpop.f32.mrf.mxu0
        %v2602 = vadd.f32 %v2519, %v2601
        %v2603 = vand.u32 %v920, 4294901760
        %2604 = vmatmul.f32.gmra.mxu0 %v2603
        %v2605 = vpop.f32.mrf.mxu0
        %v2606 = vadd.f32 %v2525, %v2605
        %2607 = vdwg.mxu0
        %v2608 = vand.u32 %v912, 4294901760
        %2609 = vmatpush.msra.mxu0 %v2608
        %v2610 = vand.u32 %v910, 4294901760
        %2611 = vmatpush.msra.mxu0 %v2610
        %v2612 = vand.u32 %v908, 4294901760
        %2613 = vmatpush.msra.mxu0 %v2612
        %v2614 = vand.u32 %v906, 4294901760
        %2615 = vmatpush.msra.mxu0 %v2614
        %v2616 = vand.u32 %v904, 4294901760
        %2617 = vmatpush.msra.mxu0 %v2616
        %v2618 = vand.u32 %v902, 4294901760
        %2619 = vmatpush.msra.mxu0 %v2618
        %v2620 = vand.u32 %v900, 4294901760
        %2621 = vmatpush.msra.mxu0 %v2620
        %v2622 = vand.u32 %v898, 4294901760
        %2623 = vmatpush.msra.mxu0 %v2622
        %v2624 = vand.u32 %v896, 4294901760
        %2625 = vmatpush.msra.mxu0 %v2624
        %v2626 = vand.u32 %v894, 4294901760
        %2627 = vmatpush.msra.mxu0 %v2626
        %v2628 = vand.u32 %v892, 4294901760
        %2629 = vmatpush.msra.mxu0 %v2628
        %v2630 = vand.u32 %v890, 4294901760
        %2631 = vmatpush.msra.mxu0 %v2630
        %v2632 = vand.u32 %v888, 4294901760
        %2633 = vmatpush.msra.mxu0 %v2632
        %v2634 = vand.u32 %v886, 4294901760
        %2635 = vmatpush.msra.mxu0 %v2634
        %v2636 = vand.u32 %v884, 4294901760
        %2637 = vmatpush.msra.mxu0 %v2636
        %v2638 = vand.u32 %v882, 4294901760
        %2639 = vmatpush.msra.mxu0 %v2638
        %v2640 = vand.u32 %v914, 4294901760
        %2641 = vmatmul.f32.gmra.mxu0 %v2640
        %v2642 = vpop.f32.mrf.mxu0
        %v2643 = vadd.f32 %v2594, %v2642
        %v2644 = vand.u32 %v916, 4294901760
        %2645 = vmatmul.f32.gmra.mxu0 %v2644
        %v2646 = vpop.f32.mrf.mxu0
        %v2647 = vadd.f32 %v2598, %v2646
        %v2648 = vand.u32 %v918, 4294901760
        %2649 = vmatmul.f32.gmra.mxu0 %v2648
        %v2650 = vpop.f32.mrf.mxu0
        %v2651 = vadd.f32 %v2602, %v2650
        %v2652 = vand.u32 %v920, 4294901760
        %2653 = vmatmul.f32.gmra.mxu0 %v2652
        %v2654 = vpop.f32.mrf.mxu0
        %v2655 = vadd.f32 %v2606, %v2654
        %2656 = vdwg.mxu0
        %v2658 = vperm.slane %v201, 0
        %v2659 = vperm.slane %v201, 1
        %v2663 = vperm.slane %v203, 0
        %v2664 = vperm.slane %v203, 1
        %v2667 = vmul.f32 %v1775, %v2663
        %v2668 = vmul.f32 %v2643, %v2664
        %v2669 = vmul.f32 %v1779, %v2663
        %v2670 = vmul.f32 %v2647, %v2664
        %v2671 = vmul.f32 %v1783, %v2663
        %v2672 = vmul.f32 %v2651, %v2664
        %v2673 = vmul.f32 %v1787, %v2663
        %v2674 = vmul.f32 %v2655, %v2664
        %v2675 = vmul.f32 %v2658, %v2663
        %v2676 = vmul.f32 %v2659, %v2664
        %2677 = vst [vmem:[%s191] sm:$0xff] %v2667
        %2678 = vst [vmem:[%s191 + $0x8] sm:$0xff] %v2668
        %2679 = vst [vmem:[%s191 + $0x10] sm:$0xff] %v2669
        %2680 = vst [vmem:[%s191 + $0x18] sm:$0xff] %v2670
        %2681 = vst [vmem:[%s191 + $0x20] sm:$0xff] %v2671
        %2682 = vst [vmem:[%s191 + $0x28] sm:$0xff] %v2672
        %2683 = vst [vmem:[%s191 + $0x30] sm:$0xff] %v2673
        %2684 = vst [vmem:[%s191 + $0x38] sm:$0xff] %v2674
        %2685 = vst [vmem:[%s191 + $0x40] sm:$0x1] %v2675
        %2686 = vst [vmem:[%s191 + $0x48] sm:$0x1] %v2676
        %s2687 = sand.u32 %s115, 1
        %s2688 = scalar_lea.sflag [#allocation3], %s2687
        %s2689 = sand.u32 %s115, 1
        %s2690 = smul.addr %s2689, 80
        %s2691 = scalar_lea.vmem [#allocation2], %s2690
        // Predicated region
        $region37: #{tpu_custom_call.1} parent=35 // pred_check
          %p2692 = pneg %p125
        $region38: #{tpu_custom_call.1} parent=35 // pred_check_branch
          %2694 = sbr.rel (%p2692) target = $region40
        $region39: #{tpu_custom_call.1} parent=35 // pred_region
          %s2695 = smul.u32 2, %s18
          %2697 = vsyncadd %s2688, 0
          %s2698 = smul.addr %s2695, 8
          %s2699 = scalar_lea.hbm %s4, %s2698
          %s2700 = sshll.u32 %s2691, 4
          %s2701 = int_to_ptr.vmem [resolvable:$true] %s2700
          %s2702 = sshll.u32 %s2699, 4
          %s2703 = int_to_ptr.hbm [resolvable:$true] %s2702
          %2708 = dma.vmem_to_hbm [thread:$0]  %s2701, 1280, %s2703, %s2688, 256, 512, 16
        $region40: #{tpu_custom_call.1} parent=35 // pred_fallthru
          _
      $region36: #{tpu_custom_call.1} parent=5 // pred_fallthru
        _
      %p2709 = scmp.le.s32.totalorder 2, %s13
      // Predicated region
      $region41: #{tpu_custom_call.1} parent=5 // pred_check
        %p2710 = pneg %p2709
      $region42: #{tpu_custom_call.1} parent=5 // pred_check_branch
        %2712 = sbr.rel (%p2710) target = $region44
      $region43: #{tpu_custom_call.1} parent=5 // pred_region
        %s2713 = ssub.s32 %s13, 2
        // Predicated region
        $region45: #{tpu_custom_call.1} parent=43 // pred_check
          %p2714 = pneg %p131
        $region46: #{tpu_custom_call.1} parent=43 // pred_check_branch
          %2716 = sbr.rel (%p2714) target = $region48
        $region47: #{tpu_custom_call.1} parent=43 // pred_region
          %s2717 = sand.u32 %s116, 1
          %s2718 = scalar_lea.sflag [#allocation3], %s2717
          %s2719 = sand.u32 %s116, 1
          %s2720 = smul.addr %s2719, 80
          %s2721 = scalar_lea.vmem [#allocation2], %s2720
          %2723 = dma.done %s2718, 1280
        $region48: #{tpu_custom_call.1} parent=43 // pred_fallthru
          _
      $region44: #{tpu_custom_call.1} parent=5 // pred_fallthru
        _
    $region6: #{tpu_custom_call.1} parent=1 // loop_footer
      %s17 = sadd.s32 1, %s13
    $region7: #{tpu_custom_call.1} parent=1 // loop_footer_branch
      %12 = sbr.rel target = $region3
    $region8: #{tpu_custom_call.1} parent=1 // loop_exit
      _
    %2724 = vsyncpa [#allocation3], 1
    %s2725 = scalar_lea.sflag [#allocation3], 1
    %2726 = vsyncpa %s2725, 1

</llo_original>
